<compile_context>
chip_gen: v7x
topology: tpu7x:2x2x1
jax: 0.10.0
libtpu: 0.0.40
codegen_flags: <defaults>
</compile_context>

<pallas_src>
import math
import functools

import jax
import jax.numpy as jnp
from jax.experimental import pallas as pl
from jax.experimental.pallas import tpu as pltpu


DEFAULT_TILE = 512                         # 512-1024 recommended; power-of-two multiple of 128
SUPPORT_RESIDENT_BYTES = 8 * 1024 * 1024   # keep resident support <= 8 MiB (v7x VMEM headroom)


def _round_up(v, m):
    return ((v + m - 1) // m) * m


def _pad2(a, rows, cols):
    return jnp.pad(a, ((0, rows - a.shape[0]), (0, cols - a.shape[1])))


def _choose_tiles(n, tile=DEFAULT_TILE):
    """Padded node dim + (row tile, reduction tile).  Idempotent on padded sizes."""
    n128 = _round_up(max(n, 1), 128)
    tk = min(tile, n128)
    np_pad = _round_up(n128, tk)
    tm = tk
    # Keep >= 2 output-row tiles when possible so the "parallel" row axis can shard
    # across both v7x TensorCores (no-op on v5e/v6e, which have a single TC).
    while np_pad // tm < 2 and tm > 128:
        tm //= 2
    return np_pad, tm, tk


# ---------------------------------------------------------------------------
# Kernel 1: support = x @ W  (skinny matmul, computed ONCE per layer)
# ---------------------------------------------------------------------------
def support_kernel(x_ref, w_ref, o_ref):
    o_ref[...] = jnp.dot(
        x_ref[...], w_ref[...], preferred_element_type=jnp.float32
    ).astype(o_ref.dtype)


def _support_matmul(x, w, *, tile_m, out_dtype):
    Np, Dp = x.shape
    Zp = w.shape[1]
    return pl.pallas_call(
        support_kernel,
        out_shape=jax.ShapeDtypeStruct((Np, Zp), out_dtype),
        grid_spec=pltpu.PrefetchScalarGridSpec(
            num_scalar_prefetch=0,
            grid=(Np // tile_m,),
            in_specs=[
                pl.BlockSpec((tile_m, Dp), lambda i: (i, 0)),   # x rows (streamed)
                pl.BlockSpec((Dp, Zp), lambda i: (0, 0)),       # W (resident)
            ],
            out_specs=pl.BlockSpec((tile_m, Zp), lambda i: (i, 0)),
        ),
        compiler_params=pltpu.CompilerParams(dimension_semantics=("parallel",)),
    )(x, w)


# ---------------------------------------------------------------------------
# Kernel 2: out = [relu](adj @ support + b)   (adjacency aggregation)
# ---------------------------------------------------------------------------
def agg_kernel_acc(support_ref, adj_ref, b_ref, o_ref, acc_ref, *,
                   apply_relu, tile_k, support_resident):
    """f32 scratch accumulator; finalize = bias add [+ ReLU] + cast."""
    k = pl.program_id(1)

    @pl.when(k == 0)
    def _():
        acc_ref[...] = jnp.zeros_like(acc_ref)

    if support_resident:
        off = pl.multiple_of(k * tile_k, tile_k)
        s = support_ref[pl.ds(off, tile_k), :]
    else:
        s = support_ref[...]

    acc_ref[...] += jnp.dot(adj_ref[...], s, preferred_element_type=jnp.float32)

    @pl.when(k == pl.num_programs(1) - 1)
    def _():
        out = acc_ref[...] + b_ref[...]
        if apply_relu:
            out = jnp.maximum(out, 0.0)
        o_ref[...] = out.astype(o_ref.dtype)


def agg_kernel_direct(support_ref, adj_ref, b_ref, o_ref, *,
                      tile_k, support_resident):
    """f32 output block is resident across k: init with bias, accumulate in place."""
    k = pl.program_id(1)

    @pl.when(k == 0)
    def _():
        o_ref[...] = jnp.broadcast_to(b_ref[...], o_ref.shape).astype(o_ref.dtype)

    if support_resident:
        off = pl.multiple_of(k * tile_k, tile_k)
        s = support_ref[pl.ds(off, tile_k), :]
    else:
        s = support_ref[...]

    o_ref[...] += jnp.dot(adj_ref[...], s, preferred_element_type=jnp.float32)


def _gcn_aggregate(support, adj, b, *, apply_relu, out_dtype, accumulate_in_out,
                   tile_m, tile_k):
    """Tiled pallas_call for out = [relu](adj @ support + b).  Inputs pre-padded."""
    Np, Zp = support.shape
    assert adj.shape == (Np, Np)
    assert Np % tile_m == 0 and Np % tile_k == 0

    support_resident = Np * Zp * support.dtype.itemsize <= SUPPORT_RESIDENT_BYTES
    if support_resident:
        # DMA'd once, stays resident in VMEM for the whole grid.
        support_spec = pl.BlockSpec((Np, Zp), lambda i, k: (0, 0))
    else:
        support_spec = pl.BlockSpec((tile_k, Zp), lambda i, k: (k, 0))

    in_specs = [
        support_spec,
        # Adjacency is the dominant HBM stream; add pipeline_mode=pl.Buffered(3) here
        # if profiling shows exposed DMA at large N.
        pl.BlockSpec((tile_m, tile_k), lambda i, k: (i, k)),
        pl.BlockSpec((1, Zp), lambda i, k: (0, 0)),            # bias (resident, f32)
    ]
    out_spec = pl.BlockSpec((tile_m, Zp), lambda i, k: (i, 0))
    grid = (Np // tile_m, Np // tile_k)

    if accumulate_in_out:
        kernel = functools.partial(agg_kernel_direct, tile_k=tile_k,
                                   support_resident=support_resident)
        scratch = []
    else:
        kernel = functools.partial(agg_kernel_acc, apply_relu=apply_relu,
                                   tile_k=tile_k, support_resident=support_resident)
        scratch = [pltpu.VMEM((tile_m, Zp), jnp.float32)]

    return pl.pallas_call(
        kernel,
        out_shape=jax.ShapeDtypeStruct((Np, Zp), out_dtype),
        grid_spec=pltpu.PrefetchScalarGridSpec(
            num_scalar_prefetch=0,
            grid=grid,
            in_specs=in_specs,
            out_specs=out_spec,
            scratch_shapes=scratch,
        ),
        compiler_params=pltpu.CompilerParams(
            dimension_semantics=("parallel", "arbitrary")),
    )(support, adj, b)


# ---------------------------------------------------------------------------
# Forward pass
# ---------------------------------------------------------------------------
def prepare_gcn(adj, w1, b1, w2, b2, *, tile=DEFAULT_TILE,
                compute_dtype=jnp.bfloat16):
    """Pad + bf16-cast the adjacency and parameters ONCE; reuse across forward calls
    and across both layers (hoists the full-adjacency pad/convert off the hot path)."""
    N = adj.shape[0]
    D, Z = w1.shape
    C = w2.shape[1]
    Np, tm, tk = _choose_tiles(N, tile)
    Dp, Zp, Cp = (_round_up(d, 128) for d in (D, Z, C))

    prepared = dict(
        adj_p=_pad2(adj, Np, Np).astype(compute_dtype),
        w1_p=_pad2(w1, Dp, Zp).astype(compute_dtype),
        b1_p=_pad2(b1.reshape(1, -1), 1, Zp).astype(jnp.float32),
        w2_p=_pad2(w2, Zp, Cp).astype(compute_dtype),
        b2_p=_pad2(b2.reshape(1, -1), 1, Cp).astype(jnp.float32),
    )
    meta = dict(N=N, C=C, Np=Np, Dp=Dp, tm=tm, tk=tk, compute_dtype=compute_dtype)
    return prepared, meta


@functools.partial(jax.jit, static_argnames=("tm", "tk"))
def _gcn_forward_padded(x_p, adj_p, w1_p, b1_p, w2_p, b2_p, *, tm, tk):
    cd = x_p.dtype  # bf16 compute dtype

    # Layer 1: support1 = x @ W1 (hoisted), then h = relu(adj @ support1 + b1) in bf16.
    s1 = _support_matmul(x_p, w1_p, tile_m=tm, out_dtype=cd)
    h = _gcn_aggregate(s1, adj_p, b1_p, apply_relu=True, out_dtype=cd,
                       accumulate_in_out=False, tile_m=tm, tile_k=tk)

    # Dropout: identity in inference mode.

    # Layer 2: support2 = h @ W2 (hoisted), then out = adj @ support2 + b2 in f32,
    # accumulated directly into the resident output block (no scratch / epilogue copy).
    s2 = _support_matmul(h, w2_p, tile_m=tm, out_dtype=cd)
    out = _gcn_aggregate(s2, adj_p, b2_p, apply_relu=False, out_dtype=jnp.float32,
                         accumulate_in_out=True, tile_m=tm, tile_k=tk)
    return out


def gcn_forward(x, prepared, meta):
    """2-layer GCN forward: relu(adj @ (x @ W1) + b1) -> adj @ (h @ W2) + b2."""
    x_p = _pad2(x, meta["Np"], meta["Dp"]).astype(meta["compute_dtype"])
    out = _gcn_forward_padded(x_p, **prepared, tm=meta["tm"], tk=meta["tk"])
    return out[:meta["N"], :meta["C"]]


def init_gcn_params(key, D, Z, C):
    """Mirrors GCN_layer.reset_param: U(-1/sqrt(D_out), 1/sqrt(D_out))."""
    k1, k2, k3, k4 = jax.random.split(key, 4)
    std1 = 1.0 / math.sqrt(Z)
    std2 = 1.0 / math.sqrt(C)
    w1 = jax.random.uniform(k1, (D, Z), jnp.float32, minval=-std1, maxval=std1)
    b1 = jax.random.uniform(k2, (Z,), jnp.float32, minval=-std1, maxval=std1)
    w2 = jax.random.uniform(k3, (Z, C), jnp.float32, minval=-std2, maxval=std2)
    b2 = jax.random.uniform(k4, (C,), jnp.float32, minval=-std2, maxval=std2)
    return w1, b1, w2, b2


if __name__ == "__main__":
    # Small GCN: N=64 nodes, D=16 input features, Z=32 hidden, C=4 classes.
    N, D, Z, C = 64, 16, 32, 4

    key = jax.random.PRNGKey(0)
    kx, kadj, kparams = jax.random.split(key, 3)

    # Node features
    x = jax.random.normal(kx, (N, D), jnp.float32)

    # Row-normalized dense adjacency (self-loops + random symmetric edges).
    raw = (jax.random.uniform(kadj, (N, N)) < 0.1).astype(jnp.float32)
    adj = jnp.maximum(raw, raw.T) + jnp.eye(N, dtype=jnp.float32)
    adj = adj / jnp.sum(adj, axis=1, keepdims=True)

    w1, b1, w2, b2 = init_gcn_params(kparams, D, Z, C)

    # Pad / cast adjacency + params once; reuse for every forward call.
    prepared, meta = prepare_gcn(adj, w1, b1, w2, b2)

    out = gcn_forward(x, prepared, meta)
    out = jax.block_until_ready(out)

    # Pure-JAX f32 reference of the same math.
    ref_h = jnp.maximum(adj @ (x @ w1) + b1[None, :], 0.0)
    ref = adj @ (ref_h @ w2) + b2[None, :]

    assert out.shape == (N, C)
    # Tolerance accounts for bf16 MXU inputs (f32 accumulation).
    assert jnp.allclose(out, ref, atol=2e-2, rtol=2e-2), (
        float(jnp.max(jnp.abs(out - ref))))

    print("KERNEL_OK")
</pallas_src>

<mosaic_0001>
module attributes {stable_mosaic.version = 11 : i64} {
  func.func @support_kernel(%arg0: i32, %arg1: memref<128x128xbf16, #tpu.memory_space<vmem>>, %arg2: memref<128x128xbf16, #tpu.memory_space<vmem>>, %arg3: memref<128x128xbf16, #tpu.memory_space<vmem>>) attributes {dimension_semantics = [#tpu.dimension_semantics<parallel>], iteration_bounds = array<i64: 1>, scalar_prefetch = 0 : i64, scratch_operands = 0 : i64, tpu.core_type = #tpu.core_type<tc>, window_params = [{transform_indices = @transform_0, window_bounds = array<i64: 128, 128>}, {pipeline_mode = #tpu.pipeline_mode<synchronous>, transform_indices = @transform_1, window_bounds = array<i64: 128, 128>}, {transform_indices = @transform_2, window_bounds = array<i64: 128, 128>}]} {
    %c0 = arith.constant 0 : index
    %c0_0 = arith.constant 0 : index
    %0 = vector.load %arg1[%c0, %c0_0] : memref<128x128xbf16, #tpu.memory_space<vmem>>, vector<128x128xbf16>
    %c0_1 = arith.constant 0 : index
    %c0_2 = arith.constant 0 : index
    %1 = vector.load %arg2[%c0_1, %c0_2] : memref<128x128xbf16, #tpu.memory_space<vmem>>, vector<128x128xbf16>
    %cst = arith.constant dense<0.000000e+00> : vector<128x128xf32>
    %2 = tpu.matmul %0, %1, %cst {dimension_numbers = #tpu.dot_dimension_numbers<[1], [0], [0], [1], [0, 0, 1, 1], [], []>} : vector<128x128xbf16>, vector<128x128xbf16>, vector<128x128xf32> -> vector<128x128xf32>
    %3 = arith.truncf %2 : vector<128x128xf32> to vector<128x128xbf16>
    %c0_3 = arith.constant 0 : index
    %c0_4 = arith.constant 0 : index
    %4 = vector.load %arg3[%c0_3, %c0_4] : memref<128x128xbf16, #tpu.memory_space<vmem>>, vector<128x128xbf16>
    tpu.vector_store %arg3[%c0_3, %c0_4], %3 {strides = array<i32>} : memref<128x128xbf16, #tpu.memory_space<vmem>>, vector<128x128xbf16>,
    return
  }
  func.func @transform_0(%arg0: i32) -> (i32, i32) {
    %c0_i32 = arith.constant 0 : i32
    %c0_i32_0 = arith.constant 0 : i32
    return %arg0, %c0_i32 : i32, i32
  }
  func.func @transform_1(%arg0: i32) -> (i32, i32) {
    %c0_i32 = arith.constant 0 : i32
    %c0_i32_0 = arith.constant 0 : i32
    %c0_i32_1 = arith.constant 0 : i32
    return %c0_i32, %c0_i32_0 : i32, i32
  }
  func.func @transform_2(%arg0: i32) -> (i32, i32) {
    %c0_i32 = arith.constant 0 : i32
    %c0_i32_0 = arith.constant 0 : i32
    return %arg0, %c0_i32 : i32, i32
  }
}

module attributes {stable_mosaic.version = 11 : i64} {
  func.func @agg_kernel_direct(%arg0: i32, %arg1: i32, %arg2: memref<128x128xbf16, #tpu.memory_space<vmem>>, %arg3: memref<128x128xbf16, #tpu.memory_space<vmem>>, %arg4: memref<1x128xf32, #tpu.memory_space<vmem>>, %arg5: memref<128x128xf32, #tpu.memory_space<vmem>>) attributes {dimension_semantics = [#tpu.dimension_semantics<parallel>, #tpu.dimension_semantics<arbitrary>], iteration_bounds = array<i64: 1, 1>, scalar_prefetch = 0 : i64, scratch_operands = 0 : i64, tpu.core_type = #tpu.core_type<tc>, window_params = [{pipeline_mode = #tpu.pipeline_mode<synchronous>, transform_indices = @transform_0, window_bounds = array<i64: 128, 128>}, {transform_indices = @transform_1, window_bounds = array<i64: 128, 128>}, {pipeline_mode = #tpu.pipeline_mode<synchronous>, transform_indices = @transform_2, window_bounds = array<i64: 1, 128>}, {transform_indices = @transform_3, window_bounds = array<i64: 128, 128>}]} {
    %c0_i32 = arith.constant 0 : i32
    %0 = arith.cmpi eq, %arg1, %c0_i32 : i32
    %1 = arith.extui %0 : i1 to i32
    %c0_i32_0 = arith.constant 0 : i32
    %2 = arith.cmpi ne, %1, %c0_i32_0 : i32
    scf.if %2 {
      %c0_7 = arith.constant 0 : index
      %c0_8 = arith.constant 0 : index
      %12 = vector.load %arg4[%c0_7, %c0_8] : memref<1x128xf32, #tpu.memory_space<vmem>>, vector<1x128xf32>
      %13 = vector.shape_cast %12 : vector<1x128xf32> to vector<1x128xf32>
      %14 = vector.broadcast %13 : vector<1x128xf32> to vector<128x128xf32>
      %c0_9 = arith.constant 0 : index
      %c0_10 = arith.constant 0 : index
      %15 = vector.load %arg5[%c0_9, %c0_10] : memref<128x128xf32, #tpu.memory_space<vmem>>, vector<128x128xf32>
      tpu.vector_store %arg5[%c0_9, %c0_10], %14 {strides = array<i32>} : memref<128x128xf32, #tpu.memory_space<vmem>>, vector<128x128xf32>,
    } else {
    }
    %c128_i32 = arith.constant 128 : i32
    %3 = arith.muli %arg1, %c128_i32 : i32
    %4 = tpu.assume_multiple %3, 128 : i32
    %5 = arith.index_cast %4 : i32 to index
    %c0 = arith.constant 0 : index
    %6 = vector.load %arg2[%5, %c0] : memref<128x128xbf16, #tpu.memory_space<vmem>>, vector<128x128xbf16>
    %c0_1 = arith.constant 0 : index
    %c0_2 = arith.constant 0 : index
    %7 = vector.load %arg5[%c0_1, %c0_2] : memref<128x128xf32, #tpu.memory_space<vmem>>, vector<128x128xf32>
    %c0_3 = arith.constant 0 : index
    %c0_4 = arith.constant 0 : index
    %8 = vector.load %arg3[%c0_3, %c0_4] : memref<128x128xbf16, #tpu.memory_space<vmem>>, vector<128x128xbf16>
    %cst = arith.constant dense<0.000000e+00> : vector<128x128xf32>
    %9 = tpu.matmul %8, %6, %cst {dimension_numbers = #tpu.dot_dimension_numbers<[1], [0], [0], [1], [0, 0, 1, 1], [], []>} : vector<128x128xbf16>, vector<128x128xbf16>, vector<128x128xf32> -> vector<128x128xf32>
    %10 = arith.addf %7, %9 : vector<128x128xf32>
    %c0_5 = arith.constant 0 : index
    %c0_6 = arith.constant 0 : index
    %11 = vector.load %arg5[%c0_5, %c0_6] : memref<128x128xf32, #tpu.memory_space<vmem>>, vector<128x128xf32>
    tpu.vector_store %arg5[%c0_5, %c0_6], %10 {strides = array<i32>} : memref<128x128xf32, #tpu.memory_space<vmem>>, vector<128x128xf32>,
    return
  }
  func.func @transform_0(%arg0: i32, %arg1: i32) -> (i32, i32) {
    %c0_i32 = arith.constant 0 : i32
    %c0_i32_0 = arith.constant 0 : i32
    %c0_i32_1 = arith.constant 0 : i32
    return %c0_i32, %c0_i32_0 : i32, i32
  }
  func.func @transform_1(%arg0: i32, %arg1: i32) -> (i32, i32) {
    %c0_i32 = arith.constant 0 : i32
    return %arg0, %arg1 : i32, i32
  }
  func.func @transform_2(%arg0: i32, %arg1: i32) -> (i32, i32) {
    %c0_i32 = arith.constant 0 : i32
    %c0_i32_0 = arith.constant 0 : i32
    %c0_i32_1 = arith.constant 0 : i32
    return %c0_i32, %c0_i32_0 : i32, i32
  }
  func.func @transform_3(%arg0: i32, %arg1: i32) -> (i32, i32) {
    %c0_i32 = arith.constant 0 : i32
    %c0_i32_0 = arith.constant 0 : i32
    return %arg0, %c0_i32 : i32, i32
  }
}

module attributes {stable_mosaic.version = 11 : i64} {
  func.func @agg_kernel_acc(%arg0: i32, %arg1: i32, %arg2: memref<128x128xbf16, #tpu.memory_space<vmem>>, %arg3: memref<128x128xbf16, #tpu.memory_space<vmem>>, %arg4: memref<1x128xf32, #tpu.memory_space<vmem>>, %arg5: memref<128x128xbf16, #tpu.memory_space<vmem>>, %arg6: memref<128x128xf32, #tpu.memory_space<vmem>>) attributes {dimension_semantics = [#tpu.dimension_semantics<parallel>, #tpu.dimension_semantics<arbitrary>], iteration_bounds = array<i64: 1, 1>, scalar_prefetch = 0 : i64, scratch_operands = 1 : i64, tpu.core_type = #tpu.core_type<tc>, window_params = [{pipeline_mode = #tpu.pipeline_mode<synchronous>, transform_indices = @transform_0, window_bounds = array<i64: 128, 128>}, {transform_indices = @transform_1, window_bounds = array<i64: 128, 128>}, {pipeline_mode = #tpu.pipeline_mode<synchronous>, transform_indices = @transform_2, window_bounds = array<i64: 1, 128>}, {transform_indices = @transform_3, window_bounds = array<i64: 128, 128>}]} {
    %c0_i32 = arith.constant 0 : i32
    %0 = arith.cmpi eq, %arg1, %c0_i32 : i32
    %1 = arith.extui %0 : i1 to i32
    %c0_i32_0 = arith.constant 0 : i32
    %2 = arith.cmpi ne, %1, %c0_i32_0 : i32
    scf.if %2 {
      %cst_9 = arith.constant 0.000000e+00 : f32
      %15 = vector.broadcast %cst_9 : f32 to vector<128x128xf32>
      %c0_10 = arith.constant 0 : index
      %c0_11 = arith.constant 0 : index
      %16 = vector.load %arg6[%c0_10, %c0_11] : memref<128x128xf32, #tpu.memory_space<vmem>>, vector<128x128xf32>
      tpu.vector_store %arg6[%c0_10, %c0_11], %15 {strides = array<i32>} : memref<128x128xf32, #tpu.memory_space<vmem>>, vector<128x128xf32>,
    } else {
    }
    %c128_i32 = arith.constant 128 : i32
    %3 = arith.muli %arg1, %c128_i32 : i32
    %4 = tpu.assume_multiple %3, 128 : i32
    %5 = arith.index_cast %4 : i32 to index
    %c0 = arith.constant 0 : index
    %6 = vector.load %arg2[%5, %c0] : memref<128x128xbf16, #tpu.memory_space<vmem>>, vector<128x128xbf16>
    %c0_1 = arith.constant 0 : index
    %c0_2 = arith.constant 0 : index
    %7 = vector.load %arg6[%c0_1, %c0_2] : memref<128x128xf32, #tpu.memory_space<vmem>>, vector<128x128xf32>
    %c0_3 = arith.constant 0 : index
    %c0_4 = arith.constant 0 : index
    %8 = vector.load %arg3[%c0_3, %c0_4] : memref<128x128xbf16, #tpu.memory_space<vmem>>, vector<128x128xbf16>
    %cst = arith.constant dense<0.000000e+00> : vector<128x128xf32>
    %9 = tpu.matmul %8, %6, %cst {dimension_numbers = #tpu.dot_dimension_numbers<[1], [0], [0], [1], [0, 0, 1, 1], [], []>} : vector<128x128xbf16>, vector<128x128xbf16>, vector<128x128xf32> -> vector<128x128xf32>
    %10 = arith.addf %7, %9 : vector<128x128xf32>
    %c0_5 = arith.constant 0 : index
    %c0_6 = arith.constant 0 : index
    %11 = vector.load %arg6[%c0_5, %c0_6] : memref<128x128xf32, #tpu.memory_space<vmem>>, vector<128x128xf32>
    tpu.vector_store %arg6[%c0_5, %c0_6], %10 {strides = array<i32>} : memref<128x128xf32, #tpu.memory_space<vmem>>, vector<128x128xf32>,
    %c0_i32_7 = arith.constant 0 : i32
    %12 = arith.cmpi eq, %arg1, %c0_i32_7 : i32
    %13 = arith.extui %12 : i1 to i32
    %c0_i32_8 = arith.constant 0 : i32
    %14 = arith.cmpi ne, %13, %c0_i32_8 : i32
    scf.if %14 {
      %c0_9 = arith.constant 0 : index
      %c0_10 = arith.constant 0 : index
      %15 = vector.load %arg6[%c0_9, %c0_10] : memref<128x128xf32, #tpu.memory_space<vmem>>, vector<128x128xf32>
      %c0_11 = arith.constant 0 : index
      %c0_12 = arith.constant 0 : index
      %16 = vector.load %arg4[%c0_11, %c0_12] : memref<1x128xf32, #tpu.memory_space<vmem>>, vector<1x128xf32>
      %17 = vector.broadcast %16 : vector<1x128xf32> to vector<128x128xf32>
      %18 = arith.addf %15, %17 : vector<128x128xf32>
      %cst_13 = arith.constant 0.000000e+00 : f32
      %19 = vector.broadcast %cst_13 : f32 to vector<128x128xf32>
      %20 = arith.maximumf %18, %19 : vector<128x128xf32>
      %21 = arith.truncf %20 : vector<128x128xf32> to vector<128x128xbf16>
      %c0_14 = arith.constant 0 : index
      %c0_15 = arith.constant 0 : index
      %22 = vector.load %arg5[%c0_14, %c0_15] : memref<128x128xbf16, #tpu.memory_space<vmem>>, vector<128x128xbf16>
      tpu.vector_store %arg5[%c0_14, %c0_15], %21 {strides = array<i32>} : memref<128x128xbf16, #tpu.memory_space<vmem>>, vector<128x128xbf16>,
    } else {
    }
    return
  }
  func.func @transform_0(%arg0: i32, %arg1: i32) -> (i32, i32) {
    %c0_i32 = arith.constant 0 : i32
    %c0_i32_0 = arith.constant 0 : i32
    %c0_i32_1 = arith.constant 0 : i32
    return %c0_i32, %c0_i32_0 : i32, i32
  }
  func.func @transform_1(%arg0: i32, %arg1: i32) -> (i32, i32) {
    %c0_i32 = arith.constant 0 : i32
    return %arg0, %arg1 : i32, i32
  }
  func.func @transform_2(%arg0: i32, %arg1: i32) -> (i32, i32) {
    %c0_i32 = arith.constant 0 : i32
    %c0_i32_0 = arith.constant 0 : i32
    %c0_i32_1 = arith.constant 0 : i32
    return %c0_i32, %c0_i32_0 : i32, i32
  }
  func.func @transform_3(%arg0: i32, %arg1: i32) -> (i32, i32) {
    %c0_i32 = arith.constant 0 : i32
    %c0_i32_0 = arith.constant 0 : i32
    return %arg0, %c0_i32 : i32, i32
  }
}

module attributes {stable_mosaic.version = 11 : i64} {
  func.func @support_kernel(%arg0: i32, %arg1: memref<128x128xbf16, #tpu.memory_space<vmem>>, %arg2: memref<128x128xbf16, #tpu.memory_space<vmem>>, %arg3: memref<128x128xbf16, #tpu.memory_space<vmem>>) attributes {dimension_semantics = [#tpu.dimension_semantics<parallel>], iteration_bounds = array<i64: 1>, scalar_prefetch = 0 : i64, scratch_operands = 0 : i64, tpu.core_type = #tpu.core_type<tc>, window_params = [{transform_indices = @transform_0, window_bounds = array<i64: 128, 128>}, {pipeline_mode = #tpu.pipeline_mode<synchronous>, transform_indices = @transform_1, window_bounds = array<i64: 128, 128>}, {transform_indices = @transform_2, window_bounds = array<i64: 128, 128>}]} {
    %c0 = arith.constant 0 : index
    %c0_0 = arith.constant 0 : index
    %0 = vector.load %arg1[%c0, %c0_0] : memref<128x128xbf16, #tpu.memory_space<vmem>>, vector<128x128xbf16>
    %c0_1 = arith.constant 0 : index
    %c0_2 = arith.constant 0 : index
    %1 = vector.load %arg2[%c0_1, %c0_2] : memref<128x128xbf16, #tpu.memory_space<vmem>>, vector<128x128xbf16>
    %cst = arith.constant dense<0.000000e+00> : vector<128x128xf32>
    %2 = tpu.matmul %0, %1, %cst {dimension_numbers = #tpu.dot_dimension_numbers<[1], [0], [0], [1], [0, 0, 1, 1], [], []>} : vector<128x128xbf16>, vector<128x128xbf16>, vector<128x128xf32> -> vector<128x128xf32>
    %3 = arith.truncf %2 : vector<128x128xf32> to vector<128x128xbf16>
    %c0_3 = arith.constant 0 : index
    %c0_4 = arith.constant 0 : index
    %4 = vector.load %arg3[%c0_3, %c0_4] : memref<128x128xbf16, #tpu.memory_space<vmem>>, vector<128x128xbf16>
    tpu.vector_store %arg3[%c0_3, %c0_4], %3 {strides = array<i32>} : memref<128x128xbf16, #tpu.memory_space<vmem>>, vector<128x128xbf16>,
    return
  }
  func.func @transform_0(%arg0: i32) -> (i32, i32) {
    %c0_i32 = arith.constant 0 : i32
    %c0_i32_0 = arith.constant 0 : i32
    return %arg0, %c0_i32 : i32, i32
  }
  func.func @transform_1(%arg0: i32) -> (i32, i32) {
    %c0_i32 = arith.constant 0 : i32
    %c0_i32_0 = arith.constant 0 : i32
    %c0_i32_1 = arith.constant 0 : i32
    return %c0_i32, %c0_i32_0 : i32, i32
  }
  func.func @transform_2(%arg0: i32) -> (i32, i32) {
    %c0_i32 = arith.constant 0 : i32
    %c0_i32_0 = arith.constant 0 : i32
    return %arg0, %c0_i32 : i32, i32
  }
}

</mosaic_0001>

<llo_original>
// kernel: _gcn_forward_padded.7
$region0: #{_gcn_forward_padded.7}
  #allocation0 [shape = 'u32[]', space=smem, size = 0x4, offset = 0x4, fixed_abs, tag = 'smem constant byte address 0x4 - core index']
  #allocation1 [shape = 'u32[144,128]{1,0:T(1,128)}', space=vmem, size = 0x12000, scoped, tag = 'internal scratch']
  %s0 = inlined_call_operand.vmem [shape: bf16[128,128], index: 0, kind: input, shape index: {}]
  %s1 = inlined_call_operand.vmem [shape: bf16[128,128], index: 1, kind: input, shape index: {}]
  %s2 = inlined_call_operand.vmem [shape: f32[1,128], index: 2, kind: input, shape index: {}]
  %s3 = inlined_call_operand.hbm [shape: f32[128,128], index: 3, kind: output, shape index: {}]
  %s4 = sld [smem:[#allocation0]]
  $region26: #{_gcn_forward_padded.7} parent=0
    _
  %s6 = ssub.s32 1, %s4
  %s7 = scalar_select 0, %s6, %s4
  $region1: #{_gcn_forward_padded.7} parent=0
    #allocation2 [shape = 'u8[65536]{0}', space=vmem, size = 0x10000, scoped, tag = 'output window, operand 0, single buffered']
    #allocation3 [shape = 's32[1]{0}', space=sflag, size = 0x4, scoped, tag = 'scoped memory for _gcn_forward_padded.7']
    %8 = vsyncpa [#allocation3], 0
    // Predicated region
    $region2: #{_gcn_forward_padded.7} parent=1 // pred_check
      _
    $region3: #{_gcn_forward_padded.7} parent=1 // pred_check_branch
      %10 = sbr.rel (0) target = $region5
    $region4: #{_gcn_forward_padded.7} parent=1 // pred_region
      _
    $region5: #{_gcn_forward_padded.7} parent=1 // pred_fallthru
      _
    // Predicated region
    $region6: #{_gcn_forward_padded.7} parent=1 // pred_check
      _
    $region7: #{_gcn_forward_padded.7} parent=1 // pred_check_branch
      %12 = sbr.rel (0) target = $region9
    $region8: #{_gcn_forward_padded.7} parent=1 // pred_region
      _
    $region9: #{_gcn_forward_padded.7} parent=1 // pred_fallthru
      _
    // Predicated region
    $region10: #{_gcn_forward_padded.7} parent=1 // pred_check
      _
    $region11: #{_gcn_forward_padded.7} parent=1 // pred_check_branch
      %14 = sbr.rel (0) target = $region13
    $region12: #{_gcn_forward_padded.7} parent=1 // pred_region
      _
    $region13: #{_gcn_forward_padded.7} parent=1 // pred_fallthru
      _
    %p16 = scmp.eq.s32.totalorder 0, 0
    // Predicated region
    $region14: #{_gcn_forward_padded.7} parent=1 // pred_check
      %p17 = pneg %p16
    $region15: #{_gcn_forward_padded.7} parent=1 // pred_check_branch
      %19 = sbr.rel (%p17) target = $region17
    $region16: #{_gcn_forward_padded.7} parent=1 // pred_region
      %v20 = vld [vmem:[%s2] sm:$0x1]
      %v22 = vlaneseq
      %v23 = vshrl.u32 %v22, 7
      %v24 = vsub.s32 0, %v23
      %v25 = vrot.slane %v20, %v24
      %27 = vst [vmem:[#allocation2] sm:$0xff] %v25
      %28 = vst [vmem:[#allocation2 + $0x8] sm:$0xff] %v25
      %29 = vst [vmem:[#allocation2 + $0x10] sm:$0xff] %v25
      %30 = vst [vmem:[#allocation2 + $0x18] sm:$0xff] %v25
      %31 = vst [vmem:[#allocation2 + $0x20] sm:$0xff] %v25
      %32 = vst [vmem:[#allocation2 + $0x28] sm:$0xff] %v25
      %33 = vst [vmem:[#allocation2 + $0x30] sm:$0xff] %v25
      %34 = vst [vmem:[#allocation2 + $0x38] sm:$0xff] %v25
      %35 = vst [vmem:[#allocation2 + $0x40] sm:$0xff] %v25
      %36 = vst [vmem:[#allocation2 + $0x48] sm:$0xff] %v25
      %37 = vst [vmem:[#allocation2 + $0x50] sm:$0xff] %v25
      %38 = vst [vmem:[#allocation2 + $0x58] sm:$0xff] %v25
      %39 = vst [vmem:[#allocation2 + $0x60] sm:$0xff] %v25
      %40 = vst [vmem:[#allocation2 + $0x68] sm:$0xff] %v25
      %41 = vst [vmem:[#allocation2 + $0x70] sm:$0xff] %v25
      %42 = vst [vmem:[#allocation2 + $0x78] sm:$0xff] %v25
    $region17: #{_gcn_forward_padded.7} parent=1 // pred_fallthru
      _
    %s43 = smul.u32 0, 128
    %s44 = sshra.s32 %s43, 3
    %s45 = sand.u32 %s43, 7
    %s46 = smul.addr %s44, 4
    %s47 = scalar_lea.vmem %s0, %s46
    %v48 = vld [vmem:[%s47] sm:$0xf]
    %v49 = vld [vmem:[%s47 + $0x4] sm:$0xf]
    %v50 = vld [vmem:[%s47 + $0x8] sm:$0xf]
    %v51 = vld [vmem:[%s47 + $0xc] sm:$0xf]
    %v52 = vld [vmem:[%s47 + $0x10] sm:$0xf]
    %v53 = vld [vmem:[%s47 + $0x14] sm:$0xf]
    %v54 = vld [vmem:[%s47 + $0x18] sm:$0xf]
    %v55 = vld [vmem:[%s47 + $0x1c] sm:$0xf]
    %v56 = vld [vmem:[%s47 + $0x20] sm:$0xf]
    %v57 = vld [vmem:[%s47 + $0x24] sm:$0xf]
    %v58 = vld [vmem:[%s47 + $0x28] sm:$0xf]
    %v59 = vld [vmem:[%s47 + $0x2c] sm:$0xf]
    %v60 = vld [vmem:[%s47 + $0x30] sm:$0xf]
    %v61 = vld [vmem:[%s47 + $0x34] sm:$0xf]
    %v62 = vld [vmem:[%s47 + $0x38] sm:$0xf]
    %v63 = vld [vmem:[%s47 + $0x3c] sm:$0xf]
    %v64 = vld [vmem:[#allocation2] sm:$0xff]
    %v65 = vld [vmem:[#allocation2 + $0x8] sm:$0xff]
    %v66 = vld [vmem:[#allocation2 + $0x10] sm:$0xff]
    %v67 = vld [vmem:[#allocation2 + $0x18] sm:$0xff]
    %v68 = vld [vmem:[#allocation2 + $0x20] sm:$0xff]
    %v69 = vld [vmem:[#allocation2 + $0x28] sm:$0xff]
    %v70 = vld [vmem:[#allocation2 + $0x30] sm:$0xff]
    %v71 = vld [vmem:[#allocation2 + $0x38] sm:$0xff]
    %v72 = vld [vmem:[#allocation2 + $0x40] sm:$0xff]
    %v73 = vld [vmem:[#allocation2 + $0x48] sm:$0xff]
    %v74 = vld [vmem:[#allocation2 + $0x50] sm:$0xff]
    %v75 = vld [vmem:[#allocation2 + $0x58] sm:$0xff]
    %v76 = vld [vmem:[#allocation2 + $0x60] sm:$0xff]
    %v77 = vld [vmem:[#allocation2 + $0x68] sm:$0xff]
    %v78 = vld [vmem:[#allocation2 + $0x70] sm:$0xff]
    %v79 = vld [vmem:[#allocation2 + $0x78] sm:$0xff]
    %v80 = vld [vmem:[%s1] sm:$0xf]
    %v81 = vld [vmem:[%s1 + $0x4] sm:$0xf]
    %v82 = vld [vmem:[%s1 + $0x8] sm:$0xf]
    %v83 = vld [vmem:[%s1 + $0xc] sm:$0xf]
    %v84 = vld [vmem:[%s1 + $0x10] sm:$0xf]
    %v85 = vld [vmem:[%s1 + $0x14] sm:$0xf]
    %v86 = vld [vmem:[%s1 + $0x18] sm:$0xf]
    %v87 = vld [vmem:[%s1 + $0x1c] sm:$0xf]
    %v88 = vld [vmem:[%s1 + $0x20] sm:$0xf]
    %v89 = vld [vmem:[%s1 + $0x24] sm:$0xf]
    %v90 = vld [vmem:[%s1 + $0x28] sm:$0xf]
    %v91 = vld [vmem:[%s1 + $0x2c] sm:$0xf]
    %v92 = vld [vmem:[%s1 + $0x30] sm:$0xf]
    %v93 = vld [vmem:[%s1 + $0x34] sm:$0xf]
    %v94 = vld [vmem:[%s1 + $0x38] sm:$0xf]
    %v95 = vld [vmem:[%s1 + $0x3c] sm:$0xf]
    %v112 = vunpack.c.l.b16 %v80
    %v113 = vunpack.c.l.b16 %v81
    %v114 = vunpack.c.l.b16 %v82
    %v115 = vunpack.c.l.b16 %v83
    %v116 = vunpack.c.l.b16 %v84
    %v117 = vunpack.c.l.b16 %v85
    %v118 = vunpack.c.l.b16 %v86
    %v119 = vunpack.c.l.b16 %v87
    %v120 = vunpack.c.l.b16 %v88
    %v121 = vunpack.c.l.b16 %v89
    %v122 = vunpack.c.l.b16 %v90
    %v123 = vunpack.c.l.b16 %v91
    %v124 = vunpack.c.l.b16 %v92
    %v125 = vunpack.c.l.b16 %v93
    %v126 = vunpack.c.l.b16 %v94
    %v127 = vunpack.c.l.b16 %v95
    %v128 = vpack.c.b16 %v113, %v112
    %v129 = vpack.c.b16 %v115, %v114
    %v130 = vpack.c.b16 %v117, %v116
    %v131 = vpack.c.b16 %v119, %v118
    %v132 = vpack.c.b16 %v121, %v120
    %v133 = vpack.c.b16 %v123, %v122
    %v134 = vpack.c.b16 %v125, %v124
    %v135 = vpack.c.b16 %v127, %v126
    %v160 = vunpack.c.l.b16 %v48
    %v161 = vunpack.c.l.b16 %v49
    %v162 = vunpack.c.l.b16 %v50
    %v163 = vunpack.c.l.b16 %v51
    %v164 = vunpack.c.l.b16 %v52
    %v165 = vunpack.c.l.b16 %v53
    %v166 = vunpack.c.l.b16 %v54
    %v167 = vunpack.c.l.b16 %v55
    %v168 = vunpack.c.l.b16 %v56
    %v169 = vunpack.c.l.b16 %v57
    %v170 = vunpack.c.l.b16 %v58
    %v171 = vunpack.c.l.b16 %v59
    %v172 = vunpack.c.l.b16 %v60
    %v173 = vunpack.c.l.b16 %v61
    %v174 = vunpack.c.l.b16 %v62
    %v175 = vunpack.c.l.b16 %v63
    %v176 = vpack.c.b16 %v161, %v160
    %v177 = vpack.c.b16 %v163, %v162
    %v178 = vpack.c.b16 %v165, %v164
    %v179 = vpack.c.b16 %v167, %v166
    %v180 = vpack.c.b16 %v169, %v168
    %v181 = vpack.c.b16 %v171, %v170
    %v182 = vpack.c.b16 %v173, %v172
    %v183 = vpack.c.b16 %v175, %v174
    %192 = vmatprep.subr.bf16.mxu0 0
    %193 = vmatpush1.bf16.msra.mxu0 %v176
    %194 = vmatprep.subr.bf16.mxu0 0
    %195 = vmatpush1.bf16.msra.mxu0 %v177
    %196 = vmatprep.subr.bf16.mxu0 0
    %197 = vmatpush1.bf16.msra.mxu0 %v178
    %198 = vmatprep.subr.bf16.mxu0 0
    %199 = vmatpush1.bf16.msra.mxu0 %v179
    %200 = vmatprep.subr.bf16.mxu0 0
    %201 = vmatpush1.bf16.msra.mxu0 %v180
    %202 = vmatprep.subr.bf16.mxu0 0
    %203 = vmatpush1.bf16.msra.mxu0 %v181
    %204 = vmatprep.subr.bf16.mxu0 0
    %205 = vmatpush1.bf16.msra.mxu0 %v182
    %206 = vmatprep.subr.bf16.mxu0 0
    %207 = vmatpush1.bf16.msra.mxu0 %v183
    %208 = vmatprep.subr.bf16.mxu0 0
    %209 = vmatpush1.bf16.msra.mxu0 0
    %210 = vmatprep.subr.bf16.mxu0 0
    %211 = vmatpush1.bf16.msra.mxu0 0
    %212 = vmatprep.subr.bf16.mxu0 0
    %213 = vmatpush1.bf16.msra.mxu0 0
    %214 = vmatprep.subr.bf16.mxu0 0
    %215 = vmatpush1.bf16.msra.mxu0 0
    %216 = vmatprep.subr.bf16.mxu0 0
    %217 = vmatpush1.bf16.msra.mxu0 0
    %218 = vmatprep.subr.bf16.mxu0 0
    %219 = vmatpush1.bf16.msra.mxu0 0
    %220 = vmatprep.subr.bf16.mxu0 0
    %221 = vmatpush1.bf16.msra.mxu0 0
    %222 = vmatprep.subr.bf16.mxu0 0
    %223 = vmatpush1.bf16.msra.mxu0 0
    %224 = vmatprep.mubr.bf16.mxu0 0
    %225 = vmatmul.mubr.bf16.gmra.mrb[0].mxu0 %v128
    %v226 = vpop.f32.mrb[0].mxu0
    %v227 = vadd.f32 0.0, %v226
    %v228 = vpop.f32.mrb[0].mxu0
    %v229 = vpop.f32.mrb[0].mxu0
    %v230 = vadd.f32 0.0, %v229
    %v231 = vpop.f32.mrb[0].mxu0
    %232 = vmatprep.mubr.bf16.mxu0 0
    %233 = vmatmul.mubr.bf16.gmra.mrb[0].mxu0 %v129
    %v234 = vpop.f32.mrb[0].mxu0
    %v235 = vadd.f32 0.0, %v234
    %v236 = vpop.f32.mrb[0].mxu0
    %v237 = vpop.f32.mrb[0].mxu0
    %v238 = vadd.f32 0.0, %v237
    %v239 = vpop.f32.mrb[0].mxu0
    %240 = vmatprep.mubr.bf16.mxu0 0
    %241 = vmatmul.mubr.bf16.gmra.mrb[0].mxu0 %v130
    %v242 = vpop.f32.mrb[0].mxu0
    %v243 = vadd.f32 0.0, %v242
    %v244 = vpop.f32.mrb[0].mxu0
    %v245 = vpop.f32.mrb[0].mxu0
    %v246 = vadd.f32 0.0, %v245
    %v247 = vpop.f32.mrb[0].mxu0
    %248 = vmatprep.mubr.bf16.mxu0 0
    %249 = vmatmul.mubr.bf16.gmra.mrb[0].mxu0 %v131
    %v250 = vpop.f32.mrb[0].mxu0
    %v251 = vadd.f32 0.0, %v250
    %v252 = vpop.f32.mrb[0].mxu0
    %v253 = vpop.f32.mrb[0].mxu0
    %v254 = vadd.f32 0.0, %v253
    %v255 = vpop.f32.mrb[0].mxu0
    %256 = vmatprep.mubr.bf16.mxu0 0
    %257 = vmatmul.mubr.bf16.gmra.mrb[0].mxu0 %v132
    %v258 = vpop.f32.mrb[0].mxu0
    %v259 = vadd.f32 0.0, %v258
    %v260 = vpop.f32.mrb[0].mxu0
    %v261 = vpop.f32.mrb[0].mxu0
    %v262 = vadd.f32 0.0, %v261
    %v263 = vpop.f32.mrb[0].mxu0
    %264 = vmatprep.mubr.bf16.mxu0 0
    %265 = vmatmul.mubr.bf16.gmra.mrb[0].mxu0 %v133
    %v266 = vpop.f32.mrb[0].mxu0
    %v267 = vadd.f32 0.0, %v266
    %v268 = vpop.f32.mrb[0].mxu0
    %v269 = vpop.f32.mrb[0].mxu0
    %v270 = vadd.f32 0.0, %v269
    %v271 = vpop.f32.mrb[0].mxu0
    %272 = vmatprep.mubr.bf16.mxu0 0
    %273 = vmatmul.mubr.bf16.gmra.mrb[0].mxu0 %v134
    %v274 = vpop.f32.mrb[0].mxu0
    %v275 = vadd.f32 0.0, %v274
    %v276 = vpop.f32.mrb[0].mxu0
    %v277 = vpop.f32.mrb[0].mxu0
    %v278 = vadd.f32 0.0, %v277
    %v279 = vpop.f32.mrb[0].mxu0
    %280 = vmatprep.mubr.bf16.mxu0 0
    %281 = vmatmul.mubr.bf16.gmra.mrb[0].mxu0 %v135
    %v282 = vpop.f32.mrb[0].mxu0
    %v283 = vadd.f32 0.0, %v282
    %v284 = vpop.f32.mrb[0].mxu0
    %v285 = vpop.f32.mrb[0].mxu0
    %v286 = vadd.f32 0.0, %v285
    %v287 = vpop.f32.mrb[0].mxu0
    %288 = vdwg.mxu0
    %v289 = vadd.f32 %v64, %v227
    %v290 = vadd.f32 %v65, %v230
    %v291 = vadd.f32 %v66, %v235
    %v292 = vadd.f32 %v67, %v238
    %v293 = vadd.f32 %v68, %v243
    %v294 = vadd.f32 %v69, %v246
    %v295 = vadd.f32 %v70, %v251
    %v296 = vadd.f32 %v71, %v254
    %v297 = vadd.f32 %v72, %v259
    %v298 = vadd.f32 %v73, %v262
    %v299 = vadd.f32 %v74, %v267
    %v300 = vadd.f32 %v75, %v270
    %v301 = vadd.f32 %v76, %v275
    %v302 = vadd.f32 %v77, %v278
    %v303 = vadd.f32 %v78, %v283
    %v304 = vadd.f32 %v79, %v286
    %305 = vst [vmem:[#allocation2] sm:$0xff] %v289
    %306 = vst [vmem:[#allocation2 + $0x8] sm:$0xff] %v290
    %307 = vst [vmem:[#allocation2 + $0x10] sm:$0xff] %v291
    %308 = vst [vmem:[#allocation2 + $0x18] sm:$0xff] %v292
    %309 = vst [vmem:[#allocation2 + $0x20] sm:$0xff] %v293
    %310 = vst [vmem:[#allocation2 + $0x28] sm:$0xff] %v294
    %311 = vst [vmem:[#allocation2 + $0x30] sm:$0xff] %v295
    %312 = vst [vmem:[#allocation2 + $0x38] sm:$0xff] %v296
    %313 = vst [vmem:[#allocation2 + $0x40] sm:$0xff] %v297
    %314 = vst [vmem:[#allocation2 + $0x48] sm:$0xff] %v298
    %315 = vst [vmem:[#allocation2 + $0x50] sm:$0xff] %v299
    %316 = vst [vmem:[#allocation2 + $0x58] sm:$0xff] %v300
    %317 = vst [vmem:[#allocation2 + $0x60] sm:$0xff] %v301
    %318 = vst [vmem:[#allocation2 + $0x68] sm:$0xff] %v302
    %319 = vst [vmem:[#allocation2 + $0x70] sm:$0xff] %v303
    %320 = vst [vmem:[#allocation2 + $0x78] sm:$0xff] %v304
    // Predicated region
    $region18: #{_gcn_forward_padded.7} parent=1 // pred_check
      _
    $region19: #{_gcn_forward_padded.7} parent=1 // pred_check_branch
      %322 = sbr.rel (0) target = $region21
    $region20: #{_gcn_forward_padded.7} parent=1 // pred_region
      %s324 = ssub.s32 2048, 2048
      %325 = vsyncadd [#allocation3], %s324
      %s326 = sshll.u32 [#allocation2], 4
      %s327 = int_to_ptr.vmem [resolvable:$true] %s326
      %332 = dma.vmem_to_hbm [thread:$0]  %s327, 2048, %s3, [#allocation3], 128, 128, 8
    $region21: #{_gcn_forward_padded.7} parent=1 // pred_fallthru
      _
    // Predicated region
    $region22: #{_gcn_forward_padded.7} parent=1 // pred_check
      _
    $region23: #{_gcn_forward_padded.7} parent=1 // pred_check_branch
      %334 = sbr.rel (0) target = $region25
    $region24: #{_gcn_forward_padded.7} parent=1 // pred_region
      %335 = dma.done [#allocation3], 2048
    $region25: #{_gcn_forward_padded.7} parent=1 // pred_fallthru
      _
    %336 = vsyncpa [#allocation3], 1

// kernel: _gcn_forward_padded.4
$region0: #{_gcn_forward_padded.4}
  #allocation0 [shape = 'u32[]', space=smem, size = 0x4, offset = 0x4, fixed_abs, tag = 'smem constant byte address 0x4 - core index']
  #allocation1 [shape = 'u32[144,128]{1,0:T(1,128)}', space=vmem, size = 0x12000, scoped, tag = 'internal scratch']
  %s0 = inlined_call_operand.hbm [shape: bf16[128,128], index: 0, kind: input, shape index: {}]
  %s1 = inlined_call_operand.hbm [shape: bf16[128,128], index: 1, kind: input, shape index: {}]
  %s2 = inlined_call_operand.vmem [shape: bf16[128,128], index: 2, kind: output, shape index: {}]
  %s3 = sld [smem:[#allocation0]]
  $region26: #{_gcn_forward_padded.4} parent=0
    _
  %s5 = ssub.s32 1, %s3
  %s6 = scalar_select 0, %s5, %s3
  $region1: #{_gcn_forward_padded.4} parent=0
    #allocation2 [shape = 'u8[32768]{0}', space=vmem, size = 0x8000, scoped, tag = 'input window, operand 0, single buffered']
    #allocation3 [shape = 's32[1]{0}', space=sflag, size = 0x4, scoped, tag = 'scoped memory for _gcn_forward_padded.4']
    #allocation4 [shape = 'u8[32768]{0}', space=vmem, size = 0x8000, scoped, tag = 'input window, operand 1, single buffered']
    #allocation5 [shape = 's32[1]{0}', space=sflag, size = 0x4, scoped, tag = 'scoped memory for _gcn_forward_padded.4']
    %7 = vsyncpa [#allocation3], 0
    %8 = vsyncpa [#allocation5], 0
    // Predicated region
    $region2: #{_gcn_forward_padded.4} parent=1 // pred_check
      _
    $region3: #{_gcn_forward_padded.4} parent=1 // pred_check_branch
      %10 = sbr.rel (0) target = $region5
    $region4: #{_gcn_forward_padded.4} parent=1 // pred_region
      %s12 = ssub.s32 1024, 1024
      %13 = vsyncadd [#allocation3], %s12
      %s14 = sshll.u32 [#allocation2], 4
      %s15 = int_to_ptr.vmem [resolvable:$true] %s14
      %20 = dma.hbm_to_vmem [thread:$0]  %s0, 1024, %s15, [#allocation3], 64, 64, 4
    $region5: #{_gcn_forward_padded.4} parent=1 // pred_fallthru
      _
    // Predicated region
    $region6: #{_gcn_forward_padded.4} parent=1 // pred_check
      _
    $region7: #{_gcn_forward_padded.4} parent=1 // pred_check_branch
      %22 = sbr.rel (0) target = $region9
    $region8: #{_gcn_forward_padded.4} parent=1 // pred_region
      %s24 = ssub.s32 1024, 1024
      %25 = vsyncadd [#allocation5], %s24
      %s26 = sshll.u32 [#allocation4], 4
      %s27 = int_to_ptr.vmem [resolvable:$true] %s26
      %32 = dma.hbm_to_vmem [thread:$0]  %s1, 1024, %s27, [#allocation5], 64, 64, 4
    $region9: #{_gcn_forward_padded.4} parent=1 // pred_fallthru
      _
    // Predicated region
    $region10: #{_gcn_forward_padded.4} parent=1 // pred_check
      _
    $region11: #{_gcn_forward_padded.4} parent=1 // pred_check_branch
      %34 = sbr.rel (0) target = $region13
    $region12: #{_gcn_forward_padded.4} parent=1 // pred_region
      %35 = dma.done [#allocation3], 1024
    $region13: #{_gcn_forward_padded.4} parent=1 // pred_fallthru
      _
    // Predicated region
    $region14: #{_gcn_forward_padded.4} parent=1 // pred_check
      _
    $region15: #{_gcn_forward_padded.4} parent=1 // pred_check_branch
      %37 = sbr.rel (0) target = $region17
    $region16: #{_gcn_forward_padded.4} parent=1 // pred_region
      %38 = dma.done [#allocation5], 1024
    $region17: #{_gcn_forward_padded.4} parent=1 // pred_fallthru
      _
    %v40 = vld [vmem:[#allocation2] sm:$0xf]
    %v41 = vld [vmem:[#allocation2 + $0x4] sm:$0xf]
    %v42 = vld [vmem:[#allocation2 + $0x8] sm:$0xf]
    %v43 = vld [vmem:[#allocation2 + $0xc] sm:$0xf]
    %v44 = vld [vmem:[#allocation2 + $0x10] sm:$0xf]
    %v45 = vld [vmem:[#allocation2 + $0x14] sm:$0xf]
    %v46 = vld [vmem:[#allocation2 + $0x18] sm:$0xf]
    %v47 = vld [vmem:[#allocation2 + $0x1c] sm:$0xf]
    %v48 = vld [vmem:[#allocation2 + $0x20] sm:$0xf]
    %v49 = vld [vmem:[#allocation2 + $0x24] sm:$0xf]
    %v50 = vld [vmem:[#allocation2 + $0x28] sm:$0xf]
    %v51 = vld [vmem:[#allocation2 + $0x2c] sm:$0xf]
    %v52 = vld [vmem:[#allocation2 + $0x30] sm:$0xf]
    %v53 = vld [vmem:[#allocation2 + $0x34] sm:$0xf]
    %v54 = vld [vmem:[#allocation2 + $0x38] sm:$0xf]
    %v55 = vld [vmem:[#allocation2 + $0x3c] sm:$0xf]
    %v56 = vld [vmem:[#allocation4] sm:$0xf]
    %v57 = vld [vmem:[#allocation4 + $0x4] sm:$0xf]
    %v58 = vld [vmem:[#allocation4 + $0x8] sm:$0xf]
    %v59 = vld [vmem:[#allocation4 + $0xc] sm:$0xf]
    %v60 = vld [vmem:[#allocation4 + $0x10] sm:$0xf]
    %v61 = vld [vmem:[#allocation4 + $0x14] sm:$0xf]
    %v62 = vld [vmem:[#allocation4 + $0x18] sm:$0xf]
    %v63 = vld [vmem:[#allocation4 + $0x1c] sm:$0xf]
    %v64 = vld [vmem:[#allocation4 + $0x20] sm:$0xf]
    %v65 = vld [vmem:[#allocation4 + $0x24] sm:$0xf]
    %v66 = vld [vmem:[#allocation4 + $0x28] sm:$0xf]
    %v67 = vld [vmem:[#allocation4 + $0x2c] sm:$0xf]
    %v68 = vld [vmem:[#allocation4 + $0x30] sm:$0xf]
    %v69 = vld [vmem:[#allocation4 + $0x34] sm:$0xf]
    %v70 = vld [vmem:[#allocation4 + $0x38] sm:$0xf]
    %v71 = vld [vmem:[#allocation4 + $0x3c] sm:$0xf]
    %v88 = vunpack.c.l.b16 %v40
    %v89 = vunpack.c.l.b16 %v41
    %v90 = vunpack.c.l.b16 %v42
    %v91 = vunpack.c.l.b16 %v43
    %v92 = vunpack.c.l.b16 %v44
    %v93 = vunpack.c.l.b16 %v45
    %v94 = vunpack.c.l.b16 %v46
    %v95 = vunpack.c.l.b16 %v47
    %v96 = vunpack.c.l.b16 %v48
    %v97 = vunpack.c.l.b16 %v49
    %v98 = vunpack.c.l.b16 %v50
    %v99 = vunpack.c.l.b16 %v51
    %v100 = vunpack.c.l.b16 %v52
    %v101 = vunpack.c.l.b16 %v53
    %v102 = vunpack.c.l.b16 %v54
    %v103 = vunpack.c.l.b16 %v55
    %v104 = vpack.c.b16 %v89, %v88
    %v105 = vpack.c.b16 %v91, %v90
    %v106 = vpack.c.b16 %v93, %v92
    %v107 = vpack.c.b16 %v95, %v94
    %v108 = vpack.c.b16 %v97, %v96
    %v109 = vpack.c.b16 %v99, %v98
    %v110 = vpack.c.b16 %v101, %v100
    %v111 = vpack.c.b16 %v103, %v102
    %v136 = vunpack.c.l.b16 %v56
    %v137 = vunpack.c.l.b16 %v57
    %v138 = vunpack.c.l.b16 %v58
    %v139 = vunpack.c.l.b16 %v59
    %v140 = vunpack.c.l.b16 %v60
    %v141 = vunpack.c.l.b16 %v61
    %v142 = vunpack.c.l.b16 %v62
    %v143 = vunpack.c.l.b16 %v63
    %v144 = vunpack.c.l.b16 %v64
    %v145 = vunpack.c.l.b16 %v65
    %v146 = vunpack.c.l.b16 %v66
    %v147 = vunpack.c.l.b16 %v67
    %v148 = vunpack.c.l.b16 %v68
    %v149 = vunpack.c.l.b16 %v69
    %v150 = vunpack.c.l.b16 %v70
    %v151 = vunpack.c.l.b16 %v71
    %v152 = vpack.c.b16 %v137, %v136
    %v153 = vpack.c.b16 %v139, %v138
    %v154 = vpack.c.b16 %v141, %v140
    %v155 = vpack.c.b16 %v143, %v142
    %v156 = vpack.c.b16 %v145, %v144
    %v157 = vpack.c.b16 %v147, %v146
    %v158 = vpack.c.b16 %v149, %v148
    %v159 = vpack.c.b16 %v151, %v150
    %168 = vmatprep.subr.bf16.mxu0 0
    %169 = vmatpush1.bf16.msra.mxu0 %v152
    %170 = vmatprep.subr.bf16.mxu0 0
    %171 = vmatpush1.bf16.msra.mxu0 %v153
    %172 = vmatprep.subr.bf16.mxu0 0
    %173 = vmatpush1.bf16.msra.mxu0 %v154
    %174 = vmatprep.subr.bf16.mxu0 0
    %175 = vmatpush1.bf16.msra.mxu0 %v155
    %176 = vmatprep.subr.bf16.mxu0 0
    %177 = vmatpush1.bf16.msra.mxu0 %v156
    %178 = vmatprep.subr.bf16.mxu0 0
    %179 = vmatpush1.bf16.msra.mxu0 %v157
    %180 = vmatprep.subr.bf16.mxu0 0
    %181 = vmatpush1.bf16.msra.mxu0 %v158
    %182 = vmatprep.subr.bf16.mxu0 0
    %183 = vmatpush1.bf16.msra.mxu0 %v159
    %184 = vmatprep.subr.bf16.mxu0 0
    %185 = vmatpush1.bf16.msra.mxu0 0
    %186 = vmatprep.subr.bf16.mxu0 0
    %187 = vmatpush1.bf16.msra.mxu0 0
    %188 = vmatprep.subr.bf16.mxu0 0
    %189 = vmatpush1.bf16.msra.mxu0 0
    %190 = vmatprep.subr.bf16.mxu0 0
    %191 = vmatpush1.bf16.msra.mxu0 0
    %192 = vmatprep.subr.bf16.mxu0 0
    %193 = vmatpush1.bf16.msra.mxu0 0
    %194 = vmatprep.subr.bf16.mxu0 0
    %195 = vmatpush1.bf16.msra.mxu0 0
    %196 = vmatprep.subr.bf16.mxu0 0
    %197 = vmatpush1.bf16.msra.mxu0 0
    %198 = vmatprep.subr.bf16.mxu0 0
    %199 = vmatpush1.bf16.msra.mxu0 0
    %200 = vmatprep.mubr.bf16.mxu0 0
    %201 = vmatmul.mubr.bf16.gmra.mrb[0].mxu0 %v104
    %v202 = vpop.f32.mrb[0].mxu0
    %v203 = vadd.f32 0.0, %v202
    %v204 = vpop.f32.mrb[0].mxu0
    %v205 = vpop.f32.mrb[0].mxu0
    %v206 = vadd.f32 0.0, %v205
    %v207 = vpop.f32.mrb[0].mxu0
    %208 = vmatprep.mubr.bf16.mxu0 0
    %209 = vmatmul.mubr.bf16.gmra.mrb[0].mxu0 %v105
    %v210 = vpop.f32.mrb[0].mxu0
    %v211 = vadd.f32 0.0, %v210
    %v212 = vpop.f32.mrb[0].mxu0
    %v213 = vpop.f32.mrb[0].mxu0
    %v214 = vadd.f32 0.0, %v213
    %v215 = vpop.f32.mrb[0].mxu0
    %216 = vmatprep.mubr.bf16.mxu0 0
    %217 = vmatmul.mubr.bf16.gmra.mrb[0].mxu0 %v106
    %v218 = vpop.f32.mrb[0].mxu0
    %v219 = vadd.f32 0.0, %v218
    %v220 = vpop.f32.mrb[0].mxu0
    %v221 = vpop.f32.mrb[0].mxu0
    %v222 = vadd.f32 0.0, %v221
    %v223 = vpop.f32.mrb[0].mxu0
    %224 = vmatprep.mubr.bf16.mxu0 0
    %225 = vmatmul.mubr.bf16.gmra.mrb[0].mxu0 %v107
    %v226 = vpop.f32.mrb[0].mxu0
    %v227 = vadd.f32 0.0, %v226
    %v228 = vpop.f32.mrb[0].mxu0
    %v229 = vpop.f32.mrb[0].mxu0
    %v230 = vadd.f32 0.0, %v229
    %v231 = vpop.f32.mrb[0].mxu0
    %232 = vmatprep.mubr.bf16.mxu0 0
    %233 = vmatmul.mubr.bf16.gmra.mrb[0].mxu0 %v108
    %v234 = vpop.f32.mrb[0].mxu0
    %v235 = vadd.f32 0.0, %v234
    %v236 = vpop.f32.mrb[0].mxu0
    %v237 = vpop.f32.mrb[0].mxu0
    %v238 = vadd.f32 0.0, %v237
    %v239 = vpop.f32.mrb[0].mxu0
    %240 = vmatprep.mubr.bf16.mxu0 0
    %241 = vmatmul.mubr.bf16.gmra.mrb[0].mxu0 %v109
    %v242 = vpop.f32.mrb[0].mxu0
    %v243 = vadd.f32 0.0, %v242
    %v244 = vpop.f32.mrb[0].mxu0
    %v245 = vpop.f32.mrb[0].mxu0
    %v246 = vadd.f32 0.0, %v245
    %v247 = vpop.f32.mrb[0].mxu0
    %248 = vmatprep.mubr.bf16.mxu0 0
    %249 = vmatmul.mubr.bf16.gmra.mrb[0].mxu0 %v110
    %v250 = vpop.f32.mrb[0].mxu0
    %v251 = vadd.f32 0.0, %v250
    %v252 = vpop.f32.mrb[0].mxu0
    %v253 = vpop.f32.mrb[0].mxu0
    %v254 = vadd.f32 0.0, %v253
    %v255 = vpop.f32.mrb[0].mxu0
    %256 = vmatprep.mubr.bf16.mxu0 0
    %257 = vmatmul.mubr.bf16.gmra.mrb[0].mxu0 %v111
    %v258 = vpop.f32.mrb[0].mxu0
    %v259 = vadd.f32 0.0, %v258
    %v260 = vpop.f32.mrb[0].mxu0
    %v261 = vpop.f32.mrb[0].mxu0
    %v262 = vadd.f32 0.0, %v261
    %v263 = vpop.f32.mrb[0].mxu0
    %264 = vdwg.mxu0
    %v265 = vpack.c.bf16 %v206, %v203
    %v266 = vpack.c.bf16 %v214, %v211
    %v267 = vpack.c.bf16 %v222, %v219
    %v268 = vpack.c.bf16 %v230, %v227
    %v269 = vpack.c.bf16 %v238, %v235
    %v270 = vpack.c.bf16 %v246, %v243
    %v271 = vpack.c.bf16 %v254, %v251
    %v272 = vpack.c.bf16 %v262, %v259
    %v281 = vunpack.c.l.b16 %v265
    %v282 = vunpack.c.h.b16 %v265
    %v283 = vunpack.c.l.b16 %v266
    %v284 = vunpack.c.h.b16 %v266
    %v285 = vunpack.c.l.b16 %v267
    %v286 = vunpack.c.h.b16 %v267
    %v287 = vunpack.c.l.b16 %v268
    %v288 = vunpack.c.h.b16 %v268
    %v289 = vunpack.c.l.b16 %v269
    %v290 = vunpack.c.h.b16 %v269
    %v291 = vunpack.c.l.b16 %v270
    %v292 = vunpack.c.h.b16 %v270
    %v293 = vunpack.c.l.b16 %v271
    %v294 = vunpack.c.h.b16 %v271
    %v295 = vunpack.c.l.b16 %v272
    %v296 = vunpack.c.h.b16 %v272
    %v297 = vpack.c.b16 %v281, %v281
    %v298 = vpack.c.b16 %v282, %v282
    %v299 = vpack.c.b16 %v283, %v283
    %v300 = vpack.c.b16 %v284, %v284
    %v301 = vpack.c.b16 %v285, %v285
    %v302 = vpack.c.b16 %v286, %v286
    %v303 = vpack.c.b16 %v287, %v287
    %v304 = vpack.c.b16 %v288, %v288
    %v305 = vpack.c.b16 %v289, %v289
    %v306 = vpack.c.b16 %v290, %v290
    %v307 = vpack.c.b16 %v291, %v291
    %v308 = vpack.c.b16 %v292, %v292
    %v309 = vpack.c.b16 %v293, %v293
    %v310 = vpack.c.b16 %v294, %v294
    %v311 = vpack.c.b16 %v295, %v295
    %v312 = vpack.c.b16 %v296, %v296
    %329 = vst [vmem:[%s2] sm:$0xf] %v297
    %330 = vst [vmem:[%s2 + $0x4] sm:$0xf] %v298
    %331 = vst [vmem:[%s2 + $0x8] sm:$0xf] %v299
    %332 = vst [vmem:[%s2 + $0xc] sm:$0xf] %v300
    %333 = vst [vmem:[%s2 + $0x10] sm:$0xf] %v301
    %334 = vst [vmem:[%s2 + $0x14] sm:$0xf] %v302
    %335 = vst [vmem:[%s2 + $0x18] sm:$0xf] %v303
    %336 = vst [vmem:[%s2 + $0x1c] sm:$0xf] %v304
    %337 = vst [vmem:[%s2 + $0x20] sm:$0xf] %v305
    %338 = vst [vmem:[%s2 + $0x24] sm:$0xf] %v306
    %339 = vst [vmem:[%s2 + $0x28] sm:$0xf] %v307
    %340 = vst [vmem:[%s2 + $0x2c] sm:$0xf] %v308
    %341 = vst [vmem:[%s2 + $0x30] sm:$0xf] %v309
    %342 = vst [vmem:[%s2 + $0x34] sm:$0xf] %v310
    %343 = vst [vmem:[%s2 + $0x38] sm:$0xf] %v311
    %344 = vst [vmem:[%s2 + $0x3c] sm:$0xf] %v312
    // Predicated region
    $region18: #{_gcn_forward_padded.4} parent=1 // pred_check
      _
    $region19: #{_gcn_forward_padded.4} parent=1 // pred_check_branch
      %346 = sbr.rel (0) target = $region21
    $region20: #{_gcn_forward_padded.4} parent=1 // pred_region
      _
    $region21: #{_gcn_forward_padded.4} parent=1 // pred_fallthru
      _
    // Predicated region
    $region22: #{_gcn_forward_padded.4} parent=1 // pred_check
      _
    $region23: #{_gcn_forward_padded.4} parent=1 // pred_check_branch
      %348 = sbr.rel (0) target = $region25
    $region24: #{_gcn_forward_padded.4} parent=1 // pred_region
      _
    $region25: #{_gcn_forward_padded.4} parent=1 // pred_fallthru
      _
    %349 = vsyncpa [#allocation3], 1
    %350 = vsyncpa [#allocation5], 1

// kernel: _gcn_forward_padded.5
$region0: #{_gcn_forward_padded.5}
  #allocation0 [shape = 'u32[]', space=smem, size = 0x4, offset = 0x4, fixed_abs, tag = 'smem constant byte address 0x4 - core index']
  #allocation1 [shape = 'u32[144,128]{1,0:T(1,128)}', space=vmem, size = 0x12000, scoped, tag = 'internal scratch']
  #allocation2 [shape = 'f32[128,128]{1,0:T(8,128)}', space=vmem, size = 0x10000, scoped, tag = 'scratch operand']
  %s0 = inlined_call_operand.vmem [shape: bf16[128,128], index: 0, kind: input, shape index: {}]
  %s1 = inlined_call_operand.vmem [shape: bf16[128,128], index: 1, kind: input, shape index: {}]
  %s2 = inlined_call_operand.vmem [shape: f32[1,128], index: 2, kind: input, shape index: {}]
  %s3 = inlined_call_operand.vmem [shape: bf16[128,128], index: 3, kind: output, shape index: {}]
  %s4 = sld [smem:[#allocation0]]
  $region30: #{_gcn_forward_padded.5} parent=0
    _
  %s6 = ssub.s32 1, %s4
  %s7 = scalar_select 0, %s6, %s4
  // Predicated region
  $region2: #{_gcn_forward_padded.5} parent=0 // pred_check
    _
  $region3: #{_gcn_forward_padded.5} parent=0 // pred_check_branch
    %9 = sbr.rel (0) target = $region5
  $region4: #{_gcn_forward_padded.5} parent=0 // pred_region
    _
  $region5: #{_gcn_forward_padded.5} parent=0 // pred_fallthru
    _
  // Predicated region
  $region6: #{_gcn_forward_padded.5} parent=0 // pred_check
    _
  $region7: #{_gcn_forward_padded.5} parent=0 // pred_check_branch
    %11 = sbr.rel (0) target = $region9
  $region8: #{_gcn_forward_padded.5} parent=0 // pred_region
    _
  $region9: #{_gcn_forward_padded.5} parent=0 // pred_fallthru
    _
  // Predicated region
  $region10: #{_gcn_forward_padded.5} parent=0 // pred_check
    _
  $region11: #{_gcn_forward_padded.5} parent=0 // pred_check_branch
    %13 = sbr.rel (0) target = $region13
  $region12: #{_gcn_forward_padded.5} parent=0 // pred_region
    _
  $region13: #{_gcn_forward_padded.5} parent=0 // pred_fallthru
    _
  %p15 = scmp.eq.s32.totalorder 0, 0
  // Predicated region
  $region14: #{_gcn_forward_padded.5} parent=0 // pred_check
    %p16 = pneg %p15
  $region15: #{_gcn_forward_padded.5} parent=0 // pred_check_branch
    %18 = sbr.rel (%p16) target = $region17
  $region16: #{_gcn_forward_padded.5} parent=0 // pred_region
    %19 = vst [vmem:[#allocation2] sm:$0xff] 0.0
    %20 = vst [vmem:[#allocation2 + $0x8] sm:$0xff] 0.0
    %21 = vst [vmem:[#allocation2 + $0x10] sm:$0xff] 0.0
    %22 = vst [vmem:[#allocation2 + $0x18] sm:$0xff] 0.0
    %23 = vst [vmem:[#allocation2 + $0x20] sm:$0xff] 0.0
    %24 = vst [vmem:[#allocation2 + $0x28] sm:$0xff] 0.0
    %25 = vst [vmem:[#allocation2 + $0x30] sm:$0xff] 0.0
    %26 = vst [vmem:[#allocation2 + $0x38] sm:$0xff] 0.0
    %27 = vst [vmem:[#allocation2 + $0x40] sm:$0xff] 0.0
    %28 = vst [vmem:[#allocation2 + $0x48] sm:$0xff] 0.0
    %29 = vst [vmem:[#allocation2 + $0x50] sm:$0xff] 0.0
    %30 = vst [vmem:[#allocation2 + $0x58] sm:$0xff] 0.0
    %31 = vst [vmem:[#allocation2 + $0x60] sm:$0xff] 0.0
    %32 = vst [vmem:[#allocation2 + $0x68] sm:$0xff] 0.0
    %33 = vst [vmem:[#allocation2 + $0x70] sm:$0xff] 0.0
    %34 = vst [vmem:[#allocation2 + $0x78] sm:$0xff] 0.0
  $region17: #{_gcn_forward_padded.5} parent=0 // pred_fallthru
    _
  %s35 = smul.u32 0, 128
  %s36 = sshra.s32 %s35, 3
  %s37 = sand.u32 %s35, 7
  %s38 = smul.addr %s36, 4
  %s39 = scalar_lea.vmem %s0, %s38
  %v40 = vld [vmem:[%s39] sm:$0xf]
  %v41 = vld [vmem:[%s39 + $0x4] sm:$0xf]
  %v42 = vld [vmem:[%s39 + $0x8] sm:$0xf]
  %v43 = vld [vmem:[%s39 + $0xc] sm:$0xf]
  %v44 = vld [vmem:[%s39 + $0x10] sm:$0xf]
  %v45 = vld [vmem:[%s39 + $0x14] sm:$0xf]
  %v46 = vld [vmem:[%s39 + $0x18] sm:$0xf]
  %v47 = vld [vmem:[%s39 + $0x1c] sm:$0xf]
  %v48 = vld [vmem:[%s39 + $0x20] sm:$0xf]
  %v49 = vld [vmem:[%s39 + $0x24] sm:$0xf]
  %v50 = vld [vmem:[%s39 + $0x28] sm:$0xf]
  %v51 = vld [vmem:[%s39 + $0x2c] sm:$0xf]
  %v52 = vld [vmem:[%s39 + $0x30] sm:$0xf]
  %v53 = vld [vmem:[%s39 + $0x34] sm:$0xf]
  %v54 = vld [vmem:[%s39 + $0x38] sm:$0xf]
  %v55 = vld [vmem:[%s39 + $0x3c] sm:$0xf]
  %v56 = vld [vmem:[#allocation2] sm:$0xff]
  %v57 = vld [vmem:[#allocation2 + $0x8] sm:$0xff]
  %v58 = vld [vmem:[#allocation2 + $0x10] sm:$0xff]
  %v59 = vld [vmem:[#allocation2 + $0x18] sm:$0xff]
  %v60 = vld [vmem:[#allocation2 + $0x20] sm:$0xff]
  %v61 = vld [vmem:[#allocation2 + $0x28] sm:$0xff]
  %v62 = vld [vmem:[#allocation2 + $0x30] sm:$0xff]
  %v63 = vld [vmem:[#allocation2 + $0x38] sm:$0xff]
  %v64 = vld [vmem:[#allocation2 + $0x40] sm:$0xff]
  %v65 = vld [vmem:[#allocation2 + $0x48] sm:$0xff]
  %v66 = vld [vmem:[#allocation2 + $0x50] sm:$0xff]
  %v67 = vld [vmem:[#allocation2 + $0x58] sm:$0xff]
  %v68 = vld [vmem:[#allocation2 + $0x60] sm:$0xff]
  %v69 = vld [vmem:[#allocation2 + $0x68] sm:$0xff]
  %v70 = vld [vmem:[#allocation2 + $0x70] sm:$0xff]
  %v71 = vld [vmem:[#allocation2 + $0x78] sm:$0xff]
  %v72 = vld [vmem:[%s1] sm:$0xf]
  %v73 = vld [vmem:[%s1 + $0x4] sm:$0xf]
  %v74 = vld [vmem:[%s1 + $0x8] sm:$0xf]
  %v75 = vld [vmem:[%s1 + $0xc] sm:$0xf]
  %v76 = vld [vmem:[%s1 + $0x10] sm:$0xf]
  %v77 = vld [vmem:[%s1 + $0x14] sm:$0xf]
  %v78 = vld [vmem:[%s1 + $0x18] sm:$0xf]
  %v79 = vld [vmem:[%s1 + $0x1c] sm:$0xf]
  %v80 = vld [vmem:[%s1 + $0x20] sm:$0xf]
  %v81 = vld [vmem:[%s1 + $0x24] sm:$0xf]
  %v82 = vld [vmem:[%s1 + $0x28] sm:$0xf]
  %v83 = vld [vmem:[%s1 + $0x2c] sm:$0xf]
  %v84 = vld [vmem:[%s1 + $0x30] sm:$0xf]
  %v85 = vld [vmem:[%s1 + $0x34] sm:$0xf]
  %v86 = vld [vmem:[%s1 + $0x38] sm:$0xf]
  %v87 = vld [vmem:[%s1 + $0x3c] sm:$0xf]
  %v104 = vunpack.c.l.b16 %v72
  %v105 = vunpack.c.l.b16 %v73
  %v106 = vunpack.c.l.b16 %v74
  %v107 = vunpack.c.l.b16 %v75
  %v108 = vunpack.c.l.b16 %v76
  %v109 = vunpack.c.l.b16 %v77
  %v110 = vunpack.c.l.b16 %v78
  %v111 = vunpack.c.l.b16 %v79
  %v112 = vunpack.c.l.b16 %v80
  %v113 = vunpack.c.l.b16 %v81
  %v114 = vunpack.c.l.b16 %v82
  %v115 = vunpack.c.l.b16 %v83
  %v116 = vunpack.c.l.b16 %v84
  %v117 = vunpack.c.l.b16 %v85
  %v118 = vunpack.c.l.b16 %v86
  %v119 = vunpack.c.l.b16 %v87
  %v120 = vpack.c.b16 %v105, %v104
  %v121 = vpack.c.b16 %v107, %v106
  %v122 = vpack.c.b16 %v109, %v108
  %v123 = vpack.c.b16 %v111, %v110
  %v124 = vpack.c.b16 %v113, %v112
  %v125 = vpack.c.b16 %v115, %v114
  %v126 = vpack.c.b16 %v117, %v116
  %v127 = vpack.c.b16 %v119, %v118
  %v152 = vunpack.c.l.b16 %v40
  %v153 = vunpack.c.l.b16 %v41
  %v154 = vunpack.c.l.b16 %v42
  %v155 = vunpack.c.l.b16 %v43
  %v156 = vunpack.c.l.b16 %v44
  %v157 = vunpack.c.l.b16 %v45
  %v158 = vunpack.c.l.b16 %v46
  %v159 = vunpack.c.l.b16 %v47
  %v160 = vunpack.c.l.b16 %v48
  %v161 = vunpack.c.l.b16 %v49
  %v162 = vunpack.c.l.b16 %v50
  %v163 = vunpack.c.l.b16 %v51
  %v164 = vunpack.c.l.b16 %v52
  %v165 = vunpack.c.l.b16 %v53
  %v166 = vunpack.c.l.b16 %v54
  %v167 = vunpack.c.l.b16 %v55
  %v168 = vpack.c.b16 %v153, %v152
  %v169 = vpack.c.b16 %v155, %v154
  %v170 = vpack.c.b16 %v157, %v156
  %v171 = vpack.c.b16 %v159, %v158
  %v172 = vpack.c.b16 %v161, %v160
  %v173 = vpack.c.b16 %v163, %v162
  %v174 = vpack.c.b16 %v165, %v164
  %v175 = vpack.c.b16 %v167, %v166
  %184 = vmatprep.subr.bf16.mxu0 0
  %185 = vmatpush1.bf16.msra.mxu0 %v168
  %186 = vmatprep.subr.bf16.mxu0 0
  %187 = vmatpush1.bf16.msra.mxu0 %v169
  %188 = vmatprep.subr.bf16.mxu0 0
  %189 = vmatpush1.bf16.msra.mxu0 %v170
  %190 = vmatprep.subr.bf16.mxu0 0
  %191 = vmatpush1.bf16.msra.mxu0 %v171
  %192 = vmatprep.subr.bf16.mxu0 0
  %193 = vmatpush1.bf16.msra.mxu0 %v172
  %194 = vmatprep.subr.bf16.mxu0 0
  %195 = vmatpush1.bf16.msra.mxu0 %v173
  %196 = vmatprep.subr.bf16.mxu0 0
  %197 = vmatpush1.bf16.msra.mxu0 %v174
  %198 = vmatprep.subr.bf16.mxu0 0
  %199 = vmatpush1.bf16.msra.mxu0 %v175
  %200 = vmatprep.subr.bf16.mxu0 0
  %201 = vmatpush1.bf16.msra.mxu0 0
  %202 = vmatprep.subr.bf16.mxu0 0
  %203 = vmatpush1.bf16.msra.mxu0 0
  %204 = vmatprep.subr.bf16.mxu0 0
  %205 = vmatpush1.bf16.msra.mxu0 0
  %206 = vmatprep.subr.bf16.mxu0 0
  %207 = vmatpush1.bf16.msra.mxu0 0
  %208 = vmatprep.subr.bf16.mxu0 0
  %209 = vmatpush1.bf16.msra.mxu0 0
  %210 = vmatprep.subr.bf16.mxu0 0
  %211 = vmatpush1.bf16.msra.mxu0 0
  %212 = vmatprep.subr.bf16.mxu0 0
  %213 = vmatpush1.bf16.msra.mxu0 0
  %214 = vmatprep.subr.bf16.mxu0 0
  %215 = vmatpush1.bf16.msra.mxu0 0
  %216 = vmatprep.mubr.bf16.mxu0 0
  %217 = vmatmul.mubr.bf16.gmra.mrb[0].mxu0 %v120
  %v218 = vpop.f32.mrb[0].mxu0
  %v219 = vadd.f32 0.0, %v218
  %v220 = vpop.f32.mrb[0].mxu0
  %v221 = vpop.f32.mrb[0].mxu0
  %v222 = vadd.f32 0.0, %v221
  %v223 = vpop.f32.mrb[0].mxu0
  %224 = vmatprep.mubr.bf16.mxu0 0
  %225 = vmatmul.mubr.bf16.gmra.mrb[0].mxu0 %v121
  %v226 = vpop.f32.mrb[0].mxu0
  %v227 = vadd.f32 0.0, %v226
  %v228 = vpop.f32.mrb[0].mxu0
  %v229 = vpop.f32.mrb[0].mxu0
  %v230 = vadd.f32 0.0, %v229
  %v231 = vpop.f32.mrb[0].mxu0
  %232 = vmatprep.mubr.bf16.mxu0 0
  %233 = vmatmul.mubr.bf16.gmra.mrb[0].mxu0 %v122
  %v234 = vpop.f32.mrb[0].mxu0
  %v235 = vadd.f32 0.0, %v234
  %v236 = vpop.f32.mrb[0].mxu0
  %v237 = vpop.f32.mrb[0].mxu0
  %v238 = vadd.f32 0.0, %v237
  %v239 = vpop.f32.mrb[0].mxu0
  %240 = vmatprep.mubr.bf16.mxu0 0
  %241 = vmatmul.mubr.bf16.gmra.mrb[0].mxu0 %v123
  %v242 = vpop.f32.mrb[0].mxu0
  %v243 = vadd.f32 0.0, %v242
  %v244 = vpop.f32.mrb[0].mxu0
  %v245 = vpop.f32.mrb[0].mxu0
  %v246 = vadd.f32 0.0, %v245
  %v247 = vpop.f32.mrb[0].mxu0
  %248 = vmatprep.mubr.bf16.mxu0 0
  %249 = vmatmul.mubr.bf16.gmra.mrb[0].mxu0 %v124
  %v250 = vpop.f32.mrb[0].mxu0
  %v251 = vadd.f32 0.0, %v250
  %v252 = vpop.f32.mrb[0].mxu0
  %v253 = vpop.f32.mrb[0].mxu0
  %v254 = vadd.f32 0.0, %v253
  %v255 = vpop.f32.mrb[0].mxu0
  %256 = vmatprep.mubr.bf16.mxu0 0
  %257 = vmatmul.mubr.bf16.gmra.mrb[0].mxu0 %v125
  %v258 = vpop.f32.mrb[0].mxu0
  %v259 = vadd.f32 0.0, %v258
  %v260 = vpop.f32.mrb[0].mxu0
  %v261 = vpop.f32.mrb[0].mxu0
  %v262 = vadd.f32 0.0, %v261
  %v263 = vpop.f32.mrb[0].mxu0
  %264 = vmatprep.mubr.bf16.mxu0 0
  %265 = vmatmul.mubr.bf16.gmra.mrb[0].mxu0 %v126
  %v266 = vpop.f32.mrb[0].mxu0
  %v267 = vadd.f32 0.0, %v266
  %v268 = vpop.f32.mrb[0].mxu0
  %v269 = vpop.f32.mrb[0].mxu0
  %v270 = vadd.f32 0.0, %v269
  %v271 = vpop.f32.mrb[0].mxu0
  %272 = vmatprep.mubr.bf16.mxu0 0
  %273 = vmatmul.mubr.bf16.gmra.mrb[0].mxu0 %v127
  %v274 = vpop.f32.mrb[0].mxu0
  %v275 = vadd.f32 0.0, %v274
  %v276 = vpop.f32.mrb[0].mxu0
  %v277 = vpop.f32.mrb[0].mxu0
  %v278 = vadd.f32 0.0, %v277
  %v279 = vpop.f32.mrb[0].mxu0
  %280 = vdwg.mxu0
  %v281 = vadd.f32 %v56, %v219
  %v282 = vadd.f32 %v57, %v222
  %v283 = vadd.f32 %v58, %v227
  %v284 = vadd.f32 %v59, %v230
  %v285 = vadd.f32 %v60, %v235
  %v286 = vadd.f32 %v61, %v238
  %v287 = vadd.f32 %v62, %v243
  %v288 = vadd.f32 %v63, %v246
  %v289 = vadd.f32 %v64, %v251
  %v290 = vadd.f32 %v65, %v254
  %v291 = vadd.f32 %v66, %v259
  %v292 = vadd.f32 %v67, %v262
  %v293 = vadd.f32 %v68, %v267
  %v294 = vadd.f32 %v69, %v270
  %v295 = vadd.f32 %v70, %v275
  %v296 = vadd.f32 %v71, %v278
  %297 = vst [vmem:[#allocation2] sm:$0xff] %v281
  %298 = vst [vmem:[#allocation2 + $0x8] sm:$0xff] %v282
  %299 = vst [vmem:[#allocation2 + $0x10] sm:$0xff] %v283
  %300 = vst [vmem:[#allocation2 + $0x18] sm:$0xff] %v284
  %301 = vst [vmem:[#allocation2 + $0x20] sm:$0xff] %v285
  %302 = vst [vmem:[#allocation2 + $0x28] sm:$0xff] %v286
  %303 = vst [vmem:[#allocation2 + $0x30] sm:$0xff] %v287
  %304 = vst [vmem:[#allocation2 + $0x38] sm:$0xff] %v288
  %305 = vst [vmem:[#allocation2 + $0x40] sm:$0xff] %v289
  %306 = vst [vmem:[#allocation2 + $0x48] sm:$0xff] %v290
  %307 = vst [vmem:[#allocation2 + $0x50] sm:$0xff] %v291
  %308 = vst [vmem:[#allocation2 + $0x58] sm:$0xff] %v292
  %309 = vst [vmem:[#allocation2 + $0x60] sm:$0xff] %v293
  %310 = vst [vmem:[#allocation2 + $0x68] sm:$0xff] %v294
  %311 = vst [vmem:[#allocation2 + $0x70] sm:$0xff] %v295
  %312 = vst [vmem:[#allocation2 + $0x78] sm:$0xff] %v296
  // Predicated region
  $region18: #{_gcn_forward_padded.5} parent=0 // pred_check
    %p313 = pneg %p15
  $region19: #{_gcn_forward_padded.5} parent=0 // pred_check_branch
    %315 = sbr.rel (%p313) target = $region21
  $region20: #{_gcn_forward_padded.5} parent=0 // pred_region
    %v316 = vld [vmem:[#allocation2] sm:$0xff]
    %v317 = vld [vmem:[#allocation2 + $0x8] sm:$0xff]
    %v318 = vld [vmem:[#allocation2 + $0x10] sm:$0xff]
    %v319 = vld [vmem:[#allocation2 + $0x18] sm:$0xff]
    %v320 = vld [vmem:[#allocation2 + $0x20] sm:$0xff]
    %v321 = vld [vmem:[#allocation2 + $0x28] sm:$0xff]
    %v322 = vld [vmem:[#allocation2 + $0x30] sm:$0xff]
    %v323 = vld [vmem:[#allocation2 + $0x38] sm:$0xff]
    %v324 = vld [vmem:[#allocation2 + $0x40] sm:$0xff]
    %v325 = vld [vmem:[#allocation2 + $0x48] sm:$0xff]
    %v326 = vld [vmem:[#allocation2 + $0x50] sm:$0xff]
    %v327 = vld [vmem:[#allocation2 + $0x58] sm:$0xff]
    %v328 = vld [vmem:[#allocation2 + $0x60] sm:$0xff]
    %v329 = vld [vmem:[#allocation2 + $0x68] sm:$0xff]
    %v330 = vld [vmem:[#allocation2 + $0x70] sm:$0xff]
    %v331 = vld [vmem:[#allocation2 + $0x78] sm:$0xff]
    %v332 = vld [vmem:[%s2] sm:$0x1]
    %v334 = vlaneseq
    %v335 = vshrl.u32 %v334, 7
    %v336 = vsub.s32 0, %v335
    %v337 = vrot.slane %v332, %v336
    %v339 = vadd.f32 %v316, %v337
    %v340 = vadd.f32 %v317, %v337
    %v341 = vadd.f32 %v318, %v337
    %v342 = vadd.f32 %v319, %v337
    %v343 = vadd.f32 %v320, %v337
    %v344 = vadd.f32 %v321, %v337
    %v345 = vadd.f32 %v322, %v337
    %v346 = vadd.f32 %v323, %v337
    %v347 = vadd.f32 %v324, %v337
    %v348 = vadd.f32 %v325, %v337
    %v349 = vadd.f32 %v326, %v337
    %v350 = vadd.f32 %v327, %v337
    %v351 = vadd.f32 %v328, %v337
    %v352 = vadd.f32 %v329, %v337
    %v353 = vadd.f32 %v330, %v337
    %v354 = vadd.f32 %v331, %v337
    %v355 = vmax.f32 %v339, 0.0
    %v356 = vmax.f32 %v340, 0.0
    %v357 = vmax.f32 %v341, 0.0
    %v358 = vmax.f32 %v342, 0.0
    %v359 = vmax.f32 %v343, 0.0
    %v360 = vmax.f32 %v344, 0.0
    %v361 = vmax.f32 %v345, 0.0
    %v362 = vmax.f32 %v346, 0.0
    %v363 = vmax.f32 %v347, 0.0
    %v364 = vmax.f32 %v348, 0.0
    %v365 = vmax.f32 %v349, 0.0
    %v366 = vmax.f32 %v350, 0.0
    %v367 = vmax.f32 %v351, 0.0
    %v368 = vmax.f32 %v352, 0.0
    %v369 = vmax.f32 %v353, 0.0
    %v370 = vmax.f32 %v354, 0.0
    %v371 = vpack.c.bf16 %v356, %v355
    %v372 = vpack.c.bf16 %v358, %v357
    %v373 = vpack.c.bf16 %v360, %v359
    %v374 = vpack.c.bf16 %v362, %v361
    %v375 = vpack.c.bf16 %v364, %v363
    %v376 = vpack.c.bf16 %v366, %v365
    %v377 = vpack.c.bf16 %v368, %v367
    %v378 = vpack.c.bf16 %v370, %v369
    %v387 = vunpack.c.l.b16 %v371
    %v388 = vunpack.c.h.b16 %v371
    %v389 = vunpack.c.l.b16 %v372
    %v390 = vunpack.c.h.b16 %v372
    %v391 = vunpack.c.l.b16 %v373
    %v392 = vunpack.c.h.b16 %v373
    %v393 = vunpack.c.l.b16 %v374
    %v394 = vunpack.c.h.b16 %v374
    %v395 = vunpack.c.l.b16 %v375
    %v396 = vunpack.c.h.b16 %v375
    %v397 = vunpack.c.l.b16 %v376
    %v398 = vunpack.c.h.b16 %v376
    %v399 = vunpack.c.l.b16 %v377
    %v400 = vunpack.c.h.b16 %v377
    %v401 = vunpack.c.l.b16 %v378
    %v402 = vunpack.c.h.b16 %v378
    %v403 = vpack.c.b16 %v387, %v387
    %v404 = vpack.c.b16 %v388, %v388
    %v405 = vpack.c.b16 %v389, %v389
    %v406 = vpack.c.b16 %v390, %v390
    %v407 = vpack.c.b16 %v391, %v391
    %v408 = vpack.c.b16 %v392, %v392
    %v409 = vpack.c.b16 %v393, %v393
    %v410 = vpack.c.b16 %v394, %v394
    %v411 = vpack.c.b16 %v395, %v395
    %v412 = vpack.c.b16 %v396, %v396
    %v413 = vpack.c.b16 %v397, %v397
    %v414 = vpack.c.b16 %v398, %v398
    %v415 = vpack.c.b16 %v399, %v399
    %v416 = vpack.c.b16 %v400, %v400
    %v417 = vpack.c.b16 %v401, %v401
    %v418 = vpack.c.b16 %v402, %v402
    %435 = vst [vmem:[%s3] sm:$0xf] %v403
    %436 = vst [vmem:[%s3 + $0x4] sm:$0xf] %v404
    %437 = vst [vmem:[%s3 + $0x8] sm:$0xf] %v405
    %438 = vst [vmem:[%s3 + $0xc] sm:$0xf] %v406
    %439 = vst [vmem:[%s3 + $0x10] sm:$0xf] %v407
    %440 = vst [vmem:[%s3 + $0x14] sm:$0xf] %v408
    %441 = vst [vmem:[%s3 + $0x18] sm:$0xf] %v409
    %442 = vst [vmem:[%s3 + $0x1c] sm:$0xf] %v410
    %443 = vst [vmem:[%s3 + $0x20] sm:$0xf] %v411
    %444 = vst [vmem:[%s3 + $0x24] sm:$0xf] %v412
    %445 = vst [vmem:[%s3 + $0x28] sm:$0xf] %v413
    %446 = vst [vmem:[%s3 + $0x2c] sm:$0xf] %v414
    %447 = vst [vmem:[%s3 + $0x30] sm:$0xf] %v415
    %448 = vst [vmem:[%s3 + $0x34] sm:$0xf] %v416
    %449 = vst [vmem:[%s3 + $0x38] sm:$0xf] %v417
    %450 = vst [vmem:[%s3 + $0x3c] sm:$0xf] %v418
  $region21: #{_gcn_forward_padded.5} parent=0 // pred_fallthru
    _
  // Predicated region
  $region22: #{_gcn_forward_padded.5} parent=0 // pred_check
    _
  $region23: #{_gcn_forward_padded.5} parent=0 // pred_check_branch
    %452 = sbr.rel (0) target = $region25
  $region24: #{_gcn_forward_padded.5} parent=0 // pred_region
    _
  $region25: #{_gcn_forward_padded.5} parent=0 // pred_fallthru
    _
  // Predicated region
  $region26: #{_gcn_forward_padded.5} parent=0 // pred_check
    _
  $region27: #{_gcn_forward_padded.5} parent=0 // pred_check_branch
    %454 = sbr.rel (0) target = $region29
  $region28: #{_gcn_forward_padded.5} parent=0 // pred_region
    _
  $region29: #{_gcn_forward_padded.5} parent=0 // pred_fallthru
    _

// kernel: _gcn_forward_padded.6
$region0: #{_gcn_forward_padded.6}
  #allocation0 [shape = 'u32[]', space=smem, size = 0x4, offset = 0x4, fixed_abs, tag = 'smem constant byte address 0x4 - core index']
  #allocation1 [shape = 'u32[144,128]{1,0:T(1,128)}', space=vmem, size = 0x12000, scoped, tag = 'internal scratch']
  %s0 = inlined_call_operand.vmem [shape: bf16[128,128], index: 0, kind: input, shape index: {}]
  %s1 = inlined_call_operand.vmem [shape: bf16[128,128], index: 1, kind: input, shape index: {}]
  %s2 = inlined_call_operand.vmem [shape: bf16[128,128], index: 2, kind: output, shape index: {}]
  %s3 = sld [smem:[#allocation0]]
  $region18: #{_gcn_forward_padded.6} parent=0
    _
  %s5 = ssub.s32 1, %s3
  %s6 = scalar_select 0, %s5, %s3
  // Predicated region
  $region2: #{_gcn_forward_padded.6} parent=0 // pred_check
    _
  $region3: #{_gcn_forward_padded.6} parent=0 // pred_check_branch
    %8 = sbr.rel (0) target = $region5
  $region4: #{_gcn_forward_padded.6} parent=0 // pred_region
    _
  $region5: #{_gcn_forward_padded.6} parent=0 // pred_fallthru
    _
  // Predicated region
  $region6: #{_gcn_forward_padded.6} parent=0 // pred_check
    _
  $region7: #{_gcn_forward_padded.6} parent=0 // pred_check_branch
    %10 = sbr.rel (0) target = $region9
  $region8: #{_gcn_forward_padded.6} parent=0 // pred_region
    _
  $region9: #{_gcn_forward_padded.6} parent=0 // pred_fallthru
    _
  %v12 = vld [vmem:[%s0] sm:$0xf]
  %v13 = vld [vmem:[%s0 + $0x4] sm:$0xf]
  %v14 = vld [vmem:[%s0 + $0x8] sm:$0xf]
  %v15 = vld [vmem:[%s0 + $0xc] sm:$0xf]
  %v16 = vld [vmem:[%s0 + $0x10] sm:$0xf]
  %v17 = vld [vmem:[%s0 + $0x14] sm:$0xf]
  %v18 = vld [vmem:[%s0 + $0x18] sm:$0xf]
  %v19 = vld [vmem:[%s0 + $0x1c] sm:$0xf]
  %v20 = vld [vmem:[%s0 + $0x20] sm:$0xf]
  %v21 = vld [vmem:[%s0 + $0x24] sm:$0xf]
  %v22 = vld [vmem:[%s0 + $0x28] sm:$0xf]
  %v23 = vld [vmem:[%s0 + $0x2c] sm:$0xf]
  %v24 = vld [vmem:[%s0 + $0x30] sm:$0xf]
  %v25 = vld [vmem:[%s0 + $0x34] sm:$0xf]
  %v26 = vld [vmem:[%s0 + $0x38] sm:$0xf]
  %v27 = vld [vmem:[%s0 + $0x3c] sm:$0xf]
  %v28 = vld [vmem:[%s1] sm:$0xf]
  %v29 = vld [vmem:[%s1 + $0x4] sm:$0xf]
  %v30 = vld [vmem:[%s1 + $0x8] sm:$0xf]
  %v31 = vld [vmem:[%s1 + $0xc] sm:$0xf]
  %v32 = vld [vmem:[%s1 + $0x10] sm:$0xf]
  %v33 = vld [vmem:[%s1 + $0x14] sm:$0xf]
  %v34 = vld [vmem:[%s1 + $0x18] sm:$0xf]
  %v35 = vld [vmem:[%s1 + $0x1c] sm:$0xf]
  %v36 = vld [vmem:[%s1 + $0x20] sm:$0xf]
  %v37 = vld [vmem:[%s1 + $0x24] sm:$0xf]
  %v38 = vld [vmem:[%s1 + $0x28] sm:$0xf]
  %v39 = vld [vmem:[%s1 + $0x2c] sm:$0xf]
  %v40 = vld [vmem:[%s1 + $0x30] sm:$0xf]
  %v41 = vld [vmem:[%s1 + $0x34] sm:$0xf]
  %v42 = vld [vmem:[%s1 + $0x38] sm:$0xf]
  %v43 = vld [vmem:[%s1 + $0x3c] sm:$0xf]
  %v60 = vunpack.c.l.b16 %v12
  %v61 = vunpack.c.l.b16 %v13
  %v62 = vunpack.c.l.b16 %v14
  %v63 = vunpack.c.l.b16 %v15
  %v64 = vunpack.c.l.b16 %v16
  %v65 = vunpack.c.l.b16 %v17
  %v66 = vunpack.c.l.b16 %v18
  %v67 = vunpack.c.l.b16 %v19
  %v68 = vunpack.c.l.b16 %v20
  %v69 = vunpack.c.l.b16 %v21
  %v70 = vunpack.c.l.b16 %v22
  %v71 = vunpack.c.l.b16 %v23
  %v72 = vunpack.c.l.b16 %v24
  %v73 = vunpack.c.l.b16 %v25
  %v74 = vunpack.c.l.b16 %v26
  %v75 = vunpack.c.l.b16 %v27
  %v76 = vpack.c.b16 %v61, %v60
  %v77 = vpack.c.b16 %v63, %v62
  %v78 = vpack.c.b16 %v65, %v64
  %v79 = vpack.c.b16 %v67, %v66
  %v80 = vpack.c.b16 %v69, %v68
  %v81 = vpack.c.b16 %v71, %v70
  %v82 = vpack.c.b16 %v73, %v72
  %v83 = vpack.c.b16 %v75, %v74
  %v108 = vunpack.c.l.b16 %v28
  %v109 = vunpack.c.l.b16 %v29
  %v110 = vunpack.c.l.b16 %v30
  %v111 = vunpack.c.l.b16 %v31
  %v112 = vunpack.c.l.b16 %v32
  %v113 = vunpack.c.l.b16 %v33
  %v114 = vunpack.c.l.b16 %v34
  %v115 = vunpack.c.l.b16 %v35
  %v116 = vunpack.c.l.b16 %v36
  %v117 = vunpack.c.l.b16 %v37
  %v118 = vunpack.c.l.b16 %v38
  %v119 = vunpack.c.l.b16 %v39
  %v120 = vunpack.c.l.b16 %v40
  %v121 = vunpack.c.l.b16 %v41
  %v122 = vunpack.c.l.b16 %v42
  %v123 = vunpack.c.l.b16 %v43
  %v124 = vpack.c.b16 %v109, %v108
  %v125 = vpack.c.b16 %v111, %v110
  %v126 = vpack.c.b16 %v113, %v112
  %v127 = vpack.c.b16 %v115, %v114
  %v128 = vpack.c.b16 %v117, %v116
  %v129 = vpack.c.b16 %v119, %v118
  %v130 = vpack.c.b16 %v121, %v120
  %v131 = vpack.c.b16 %v123, %v122
  %140 = vmatprep.subr.bf16.mxu0 0
  %141 = vmatpush1.bf16.msra.mxu0 %v124
  %142 = vmatprep.subr.bf16.mxu0 0
  %143 = vmatpush1.bf16.msra.mxu0 %v125
  %144 = vmatprep.subr.bf16.mxu0 0
  %145 = vmatpush1.bf16.msra.mxu0 %v126
  %146 = vmatprep.subr.bf16.mxu0 0
  %147 = vmatpush1.bf16.msra.mxu0 %v127
  %148 = vmatprep.subr.bf16.mxu0 0
  %149 = vmatpush1.bf16.msra.mxu0 %v128
  %150 = vmatprep.subr.bf16.mxu0 0
  %151 = vmatpush1.bf16.msra.mxu0 %v129
  %152 = vmatprep.subr.bf16.mxu0 0
  %153 = vmatpush1.bf16.msra.mxu0 %v130
  %154 = vmatprep.subr.bf16.mxu0 0
  %155 = vmatpush1.bf16.msra.mxu0 %v131
  %156 = vmatprep.subr.bf16.mxu0 0
  %157 = vmatpush1.bf16.msra.mxu0 0
  %158 = vmatprep.subr.bf16.mxu0 0
  %159 = vmatpush1.bf16.msra.mxu0 0
  %160 = vmatprep.subr.bf16.mxu0 0
  %161 = vmatpush1.bf16.msra.mxu0 0
  %162 = vmatprep.subr.bf16.mxu0 0
  %163 = vmatpush1.bf16.msra.mxu0 0
  %164 = vmatprep.subr.bf16.mxu0 0
  %165 = vmatpush1.bf16.msra.mxu0 0
  %166 = vmatprep.subr.bf16.mxu0 0
  %167 = vmatpush1.bf16.msra.mxu0 0
  %168 = vmatprep.subr.bf16.mxu0 0
  %169 = vmatpush1.bf16.msra.mxu0 0
  %170 = vmatprep.subr.bf16.mxu0 0
  %171 = vmatpush1.bf16.msra.mxu0 0
  %172 = vmatprep.mubr.bf16.mxu0 0
  %173 = vmatmul.mubr.bf16.gmra.mrb[0].mxu0 %v76
  %v174 = vpop.f32.mrb[0].mxu0
  %v175 = vadd.f32 0.0, %v174
  %v176 = vpop.f32.mrb[0].mxu0
  %v177 = vpop.f32.mrb[0].mxu0
  %v178 = vadd.f32 0.0, %v177
  %v179 = vpop.f32.mrb[0].mxu0
  %180 = vmatprep.mubr.bf16.mxu0 0
  %181 = vmatmul.mubr.bf16.gmra.mrb[0].mxu0 %v77
  %v182 = vpop.f32.mrb[0].mxu0
  %v183 = vadd.f32 0.0, %v182
  %v184 = vpop.f32.mrb[0].mxu0
  %v185 = vpop.f32.mrb[0].mxu0
  %v186 = vadd.f32 0.0, %v185
  %v187 = vpop.f32.mrb[0].mxu0
  %188 = vmatprep.mubr.bf16.mxu0 0
  %189 = vmatmul.mubr.bf16.gmra.mrb[0].mxu0 %v78
  %v190 = vpop.f32.mrb[0].mxu0
  %v191 = vadd.f32 0.0, %v190
  %v192 = vpop.f32.mrb[0].mxu0
  %v193 = vpop.f32.mrb[0].mxu0
  %v194 = vadd.f32 0.0, %v193
  %v195 = vpop.f32.mrb[0].mxu0
  %196 = vmatprep.mubr.bf16.mxu0 0
  %197 = vmatmul.mubr.bf16.gmra.mrb[0].mxu0 %v79
  %v198 = vpop.f32.mrb[0].mxu0
  %v199 = vadd.f32 0.0, %v198
  %v200 = vpop.f32.mrb[0].mxu0
  %v201 = vpop.f32.mrb[0].mxu0
  %v202 = vadd.f32 0.0, %v201
  %v203 = vpop.f32.mrb[0].mxu0
  %204 = vmatprep.mubr.bf16.mxu0 0
  %205 = vmatmul.mubr.bf16.gmra.mrb[0].mxu0 %v80
  %v206 = vpop.f32.mrb[0].mxu0
  %v207 = vadd.f32 0.0, %v206
  %v208 = vpop.f32.mrb[0].mxu0
  %v209 = vpop.f32.mrb[0].mxu0
  %v210 = vadd.f32 0.0, %v209
  %v211 = vpop.f32.mrb[0].mxu0
  %212 = vmatprep.mubr.bf16.mxu0 0
  %213 = vmatmul.mubr.bf16.gmra.mrb[0].mxu0 %v81
  %v214 = vpop.f32.mrb[0].mxu0
  %v215 = vadd.f32 0.0, %v214
  %v216 = vpop.f32.mrb[0].mxu0
  %v217 = vpop.f32.mrb[0].mxu0
  %v218 = vadd.f32 0.0, %v217
  %v219 = vpop.f32.mrb[0].mxu0
  %220 = vmatprep.mubr.bf16.mxu0 0
  %221 = vmatmul.mubr.bf16.gmra.mrb[0].mxu0 %v82
  %v222 = vpop.f32.mrb[0].mxu0
  %v223 = vadd.f32 0.0, %v222
  %v224 = vpop.f32.mrb[0].mxu0
  %v225 = vpop.f32.mrb[0].mxu0
  %v226 = vadd.f32 0.0, %v225
  %v227 = vpop.f32.mrb[0].mxu0
  %228 = vmatprep.mubr.bf16.mxu0 0
  %229 = vmatmul.mubr.bf16.gmra.mrb[0].mxu0 %v83
  %v230 = vpop.f32.mrb[0].mxu0
  %v231 = vadd.f32 0.0, %v230
  %v232 = vpop.f32.mrb[0].mxu0
  %v233 = vpop.f32.mrb[0].mxu0
  %v234 = vadd.f32 0.0, %v233
  %v235 = vpop.f32.mrb[0].mxu0
  %236 = vdwg.mxu0
  %v237 = vpack.c.bf16 %v178, %v175
  %v238 = vpack.c.bf16 %v186, %v183
  %v239 = vpack.c.bf16 %v194, %v191
  %v240 = vpack.c.bf16 %v202, %v199
  %v241 = vpack.c.bf16 %v210, %v207
  %v242 = vpack.c.bf16 %v218, %v215
  %v243 = vpack.c.bf16 %v226, %v223
  %v244 = vpack.c.bf16 %v234, %v231
  %v253 = vunpack.c.l.b16 %v237
  %v254 = vunpack.c.h.b16 %v237
  %v255 = vunpack.c.l.b16 %v238
  %v256 = vunpack.c.h.b16 %v238
  %v257 = vunpack.c.l.b16 %v239
  %v258 = vunpack.c.h.b16 %v239
  %v259 = vunpack.c.l.b16 %v240
  %v260 = vunpack.c.h.b16 %v240
  %v261 = vunpack.c.l.b16 %v241
  %v262 = vunpack.c.h.b16 %v241
  %v263 = vunpack.c.l.b16 %v242
  %v264 = vunpack.c.h.b16 %v242
  %v265 = vunpack.c.l.b16 %v243
  %v266 = vunpack.c.h.b16 %v243
  %v267 = vunpack.c.l.b16 %v244
  %v268 = vunpack.c.h.b16 %v244
  %v269 = vpack.c.b16 %v253, %v253
  %v270 = vpack.c.b16 %v254, %v254
  %v271 = vpack.c.b16 %v255, %v255
  %v272 = vpack.c.b16 %v256, %v256
  %v273 = vpack.c.b16 %v257, %v257
  %v274 = vpack.c.b16 %v258, %v258
  %v275 = vpack.c.b16 %v259, %v259
  %v276 = vpack.c.b16 %v260, %v260
  %v277 = vpack.c.b16 %v261, %v261
  %v278 = vpack.c.b16 %v262, %v262
  %v279 = vpack.c.b16 %v263, %v263
  %v280 = vpack.c.b16 %v264, %v264
  %v281 = vpack.c.b16 %v265, %v265
  %v282 = vpack.c.b16 %v266, %v266
  %v283 = vpack.c.b16 %v267, %v267
  %v284 = vpack.c.b16 %v268, %v268
  %301 = vst [vmem:[%s2] sm:$0xf] %v269
  %302 = vst [vmem:[%s2 + $0x4] sm:$0xf] %v270
  %303 = vst [vmem:[%s2 + $0x8] sm:$0xf] %v271
  %304 = vst [vmem:[%s2 + $0xc] sm:$0xf] %v272
  %305 = vst [vmem:[%s2 + $0x10] sm:$0xf] %v273
  %306 = vst [vmem:[%s2 + $0x14] sm:$0xf] %v274
  %307 = vst [vmem:[%s2 + $0x18] sm:$0xf] %v275
  %308 = vst [vmem:[%s2 + $0x1c] sm:$0xf] %v276
  %309 = vst [vmem:[%s2 + $0x20] sm:$0xf] %v277
  %310 = vst [vmem:[%s2 + $0x24] sm:$0xf] %v278
  %311 = vst [vmem:[%s2 + $0x28] sm:$0xf] %v279
  %312 = vst [vmem:[%s2 + $0x2c] sm:$0xf] %v280
  %313 = vst [vmem:[%s2 + $0x30] sm:$0xf] %v281
  %314 = vst [vmem:[%s2 + $0x34] sm:$0xf] %v282
  %315 = vst [vmem:[%s2 + $0x38] sm:$0xf] %v283
  %316 = vst [vmem:[%s2 + $0x3c] sm:$0xf] %v284
  // Predicated region
  $region10: #{_gcn_forward_padded.6} parent=0 // pred_check
    _
  $region11: #{_gcn_forward_padded.6} parent=0 // pred_check_branch
    %318 = sbr.rel (0) target = $region13
  $region12: #{_gcn_forward_padded.6} parent=0 // pred_region
    _
  $region13: #{_gcn_forward_padded.6} parent=0 // pred_fallthru
    _
  // Predicated region
  $region14: #{_gcn_forward_padded.6} parent=0 // pred_check
    _
  $region15: #{_gcn_forward_padded.6} parent=0 // pred_check_branch
    %320 = sbr.rel (0) target = $region17
  $region16: #{_gcn_forward_padded.6} parent=0 // pred_region
    _
  $region17: #{_gcn_forward_padded.6} parent=0 // pred_fallthru
    _

</llo_original>
